<compile_context>
chip_gen: v7x
topology: tpu7x:2x2x1
jax: 0.10.0
libtpu: 0.0.40
codegen_flags: <defaults>
</compile_context>

<pallas_src>
import functools

import jax
import jax.numpy as jnp
from jax import lax
from jax.experimental import pallas as pl
from jax.experimental.pallas import tpu as pltpu


# ----------------------------- Pallas kernel ------------------------------- #

def _fused_lstm_kernel(*refs, hidden_size, num_layers, seq_len, batch_pad):
    """Fused stacked-LSTM + FC head.

    refs layout (inputs, outputs, scratch):
      x_ref                                  (T*Bp, I)       flat time-major input
      [w_ih_l (in_l,4H), w_hh_l (H,4H), b_l (1,4H)] * L      gate cols = (i,f,o,g)
      w_fc (H, 128), b_fc (1, 128)                           lane-padded FC head
      out_ref (Bp, 128)
      gates_scr (T*Bp, 4H), seq_scr (T*Bp, H)
    """
    H = hidden_size
    L = num_layers
    T = seq_len
    Bp = batch_pad

    x_ref = refs[0]
    layer_refs = refs[1:1 + 3 * L]
    w_fc_ref = refs[1 + 3 * L]
    b_fc_ref = refs[2 + 3 * L]
    out_ref = refs[3 + 3 * L]
    gates_scr, seq_scr = refs[4 + 3 * L:]

    h_last = jnp.zeros((Bp, H), jnp.float32)
    for l in range(L):
        w_ih = layer_refs[3 * l][...]          # (in_l, 4H)
        w_hh = layer_refs[3 * l + 1][...]      # (H, 4H)
        b = layer_refs[3 * l + 2][...]         # (1, 4H)

        # ---- time-parallel input projection (off the serial path) ---------
        # Bias broadcast folded in here, once per layer (not per step).
        xin = x_ref[...] if l == 0 else seq_scr[...]
        gates_scr[...] = jnp.dot(
            xin, w_ih, preferred_element_type=jnp.float32) + b

        is_last_layer = (l == L - 1)

        # ---- recurrence: h/c carried in vregs ------------------------------
        def step(t, carry, w_hh=w_hh, is_last_layer=is_last_layer):
            h, c = carry                                     # (Bp, H) each
            row = pl.multiple_of(t * Bp, 8)
            gates = gates_scr[pl.ds(row, Bp), :] + jnp.dot(
                h, w_hh, preferred_element_type=jnp.float32)  # (Bp, 4H)

            # Full-vreg activations (EUP slot), then slice H-lane gate blocks.
            # Gate columns are ordered (i, f, o, g).
            sg = jax.nn.sigmoid(gates)
            th = jnp.tanh(gates)
            i_g = sg[:, 0 * H:1 * H]
            f_g = sg[:, 1 * H:2 * H]
            o_g = sg[:, 2 * H:3 * H]
            g_g = th[:, 3 * H:4 * H]

            c_new = f_g * c + i_g * g_g
            h_new = o_g * jnp.tanh(c_new)
            if not is_last_layer:
                seq_scr[pl.ds(row, Bp), :] = h_new   # next layer's proj input
            return h_new, c_new

        zeros = jnp.zeros((Bp, H), jnp.float32)
        h_last, _ = lax.fori_loop(0, T, step, (zeros, zeros),
                                  unroll=min(T, 8))

    # ---- lane-dense FC head on the last timestep of the last layer --------
    out_ref[...] = (jnp.dot(h_last, w_fc_ref[...],
                            preferred_element_type=jnp.float32) + b_fc_ref[...])


# ------------------------------ Host wrapper ------------------------------- #

def _reorder_ifgo_to_ifog(w, hidden_size):
    """Reorder leading gate blocks from PyTorch (i,f,g,o) to (i,f,o,g)."""
    H = hidden_size
    return jnp.concatenate([w[:2 * H], w[3 * H:4 * H], w[2 * H:3 * H]], axis=0)


def lstm_forward(x, params, hidden_size, num_layers):
    """x: (B, T, input_size) batch-first -> (B, 1), matching the PyTorch module."""
    B, T, I = x.shape
    H = hidden_size
    Bp = max(8, ((B + 7) // 8) * 8)            # pad batch to full f32 sublanes

    # (B, T, I) -> time-major, batch padded, flattened to (T*Bp, I) host-side
    # so the kernel never reshapes (in-kernel reshapes are not views).
    x_tm = jnp.transpose(x, (1, 0, 2)).astype(jnp.float32)        # (T, B, I)
    if Bp != B:
        x_tm = jnp.pad(x_tm, ((0, 0), (0, Bp - B), (0, 0)))
    x_flat = x_tm.reshape(T * Bp, I)

    inputs = [x_flat]
    for l in range(num_layers):
        w_ih, w_hh, b_ih, b_hh = params[f"layer{l}"]
        inputs.append(_reorder_ifgo_to_ifog(w_ih, H).T)           # (in_l, 4H)
        inputs.append(_reorder_ifgo_to_ifog(w_hh, H).T)           # (H, 4H)
        inputs.append(_reorder_ifgo_to_ifog(b_ih + b_hh, H).reshape(1, -1))  # (1, 4H)
    w_fc, b_fc = params["fc"]
    # Lane-dense FC head: zero-pad the single output column to 128 lanes.
    inputs.append(jnp.pad(w_fc.T, ((0, 0), (0, 127))).astype(jnp.float32))   # (H, 128)
    inputs.append(jnp.pad(b_fc.reshape(1, 1), ((0, 0), (0, 127))).astype(jnp.float32))

    vmem = pl.BlockSpec(memory_space=pltpu.MemorySpace.VMEM)
    out = pl.pallas_call(
        functools.partial(_fused_lstm_kernel, hidden_size=H,
                          num_layers=num_layers, seq_len=T, batch_pad=Bp),
        out_shape=jax.ShapeDtypeStruct((Bp, 128), jnp.float32),
        in_specs=[vmem] * len(inputs),
        out_specs=vmem,
        scratch_shapes=[
            pltpu.VMEM((T * Bp, 4 * H), jnp.float32),   # time-parallel x-gates
            pltpu.VMEM((T * Bp, H), jnp.float32),       # layer sequence output
        ],
    )(*inputs)
    return out[:B, :1]


# ----------------------------- Param init / ref ---------------------------- #

def init_params(key, input_size, hidden_size, num_layers):
    """Deterministic init matching nn.LSTM/nn.Linear shapes (uniform(-k, k))."""
    params = {}
    k = 1.0 / jnp.sqrt(hidden_size)
    in_sz = input_size
    for l in range(num_layers):
        key, k1, k2, k3, k4 = jax.random.split(key, 5)
        w_ih = jax.random.uniform(k1, (4 * hidden_size, in_sz), jnp.float32, -k, k)
        w_hh = jax.random.uniform(k2, (4 * hidden_size, hidden_size), jnp.float32, -k, k)
        b_ih = jax.random.uniform(k3, (4 * hidden_size,), jnp.float32, -k, k)
        b_hh = jax.random.uniform(k4, (4 * hidden_size,), jnp.float32, -k, k)
        params[f"layer{l}"] = (w_ih, w_hh, b_ih, b_hh)
        in_sz = hidden_size
    key, k1, k2 = jax.random.split(key, 3)
    kf = 1.0 / jnp.sqrt(hidden_size)
    w_fc = jax.random.uniform(k1, (1, hidden_size), jnp.float32, -kf, kf)
    b_fc = jax.random.uniform(k2, (1,), jnp.float32, -kf, kf)
    params["fc"] = (w_fc, b_fc)
    return params


def lstm_forward_ref(x, params, hidden_size, num_layers):
    """Pure-JAX reference (PyTorch gate order i,f,g,o) for correctness checking."""
    B = x.shape[0]
    H = hidden_size
    h_seq = x.astype(jnp.float32)
    for l in range(num_layers):
        w_ih, w_hh, b_ih, b_hh = params[f"layer{l}"]
        h = jnp.zeros((B, H), jnp.float32)
        c = jnp.zeros((B, H), jnp.float32)
        outs = []
        for t in range(h_seq.shape[1]):
            g = h_seq[:, t, :] @ w_ih.T + b_ih + h @ w_hh.T + b_hh
            i = jax.nn.sigmoid(g[:, 0 * H:1 * H])
            f = jax.nn.sigmoid(g[:, 1 * H:2 * H])
            gg = jnp.tanh(g[:, 2 * H:3 * H])
            o = jax.nn.sigmoid(g[:, 3 * H:4 * H])
            c = f * c + i * gg
            h = o * jnp.tanh(c)
            outs.append(h)
        h_seq = jnp.stack(outs, axis=1)
    w_fc, b_fc = params["fc"]
    return h_seq[:, -1, :] @ w_fc.T + b_fc


# ---------------------------------- main ----------------------------------- #

if __name__ == "__main__":
    INPUT_SIZE = 4
    HIDDEN_SIZE = 32
    NUM_LAYERS = 2
    BATCH = 2
    SEQ = 8

    key = jax.random.PRNGKey(0)
    key, xkey = jax.random.split(key)
    x = jax.random.normal(xkey, (BATCH, SEQ, INPUT_SIZE), dtype=jnp.float32)
    params = init_params(key, INPUT_SIZE, HIDDEN_SIZE, NUM_LAYERS)

    out = lstm_forward(x, params, HIDDEN_SIZE, NUM_LAYERS)
    out = jax.block_until_ready(out)

    ref = lstm_forward_ref(x, params, HIDDEN_SIZE, NUM_LAYERS)
    assert out.shape == (BATCH, 1), out.shape
    assert jnp.allclose(out, ref, atol=1e-5, rtol=1e-5), (out, ref)

    print("KERNEL_OK")
</pallas_src>

<mosaic_0001>
module attributes {stable_mosaic.version = 11 : i64} {
  func.func @_fused_lstm_kernel(%arg0: memref<64x4xf32, #tpu.memory_space<vmem>>, %arg1: memref<4x128xf32, #tpu.memory_space<vmem>>, %arg2: memref<32x128xf32, #tpu.memory_space<vmem>>, %arg3: memref<1x128xf32, #tpu.memory_space<vmem>>, %arg4: memref<32x128xf32, #tpu.memory_space<vmem>>, %arg5: memref<32x128xf32, #tpu.memory_space<vmem>>, %arg6: memref<1x128xf32, #tpu.memory_space<vmem>>, %arg7: memref<32x128xf32, #tpu.memory_space<vmem>>, %arg8: memref<1x128xf32, #tpu.memory_space<vmem>>, %arg9: memref<8x128xf32, #tpu.memory_space<vmem>>, %arg10: memref<64x128xf32, #tpu.memory_space<vmem>>, %arg11: memref<64x32xf32, #tpu.memory_space<vmem>>) attributes {dimension_semantics = [], scalar_prefetch = 0 : i64, scratch_operands = 2 : i64, tpu.core_type = #tpu.core_type<tc>} {
    %c0 = arith.constant 0 : index
    %c0_0 = arith.constant 0 : index
    %0 = vector.load %arg1[%c0, %c0_0] : memref<4x128xf32, #tpu.memory_space<vmem>>, vector<4x128xf32>
    %c0_1 = arith.constant 0 : index
    %c0_2 = arith.constant 0 : index
    %1 = vector.load %arg2[%c0_1, %c0_2] : memref<32x128xf32, #tpu.memory_space<vmem>>, vector<32x128xf32>
    %c0_3 = arith.constant 0 : index
    %c0_4 = arith.constant 0 : index
    %2 = vector.load %arg3[%c0_3, %c0_4] : memref<1x128xf32, #tpu.memory_space<vmem>>, vector<1x128xf32>
    %c0_5 = arith.constant 0 : index
    %c0_6 = arith.constant 0 : index
    %3 = vector.load %arg0[%c0_5, %c0_6] : memref<64x4xf32, #tpu.memory_space<vmem>>, vector<64x4xf32>
    %cst = arith.constant dense<0.000000e+00> : vector<64x128xf32>
    %4 = tpu.matmul %3, %0, %cst {dimension_numbers = #tpu.dot_dimension_numbers<[1], [0], [0], [1], [0, 0, 1, 1], [], []>} : vector<64x4xf32>, vector<4x128xf32>, vector<64x128xf32> -> vector<64x128xf32>
    %5 = vector.broadcast %2 : vector<1x128xf32> to vector<64x128xf32>
    %6 = arith.addf %4, %5 : vector<64x128xf32>
    %c0_7 = arith.constant 0 : index
    %c0_8 = arith.constant 0 : index
    %7 = vector.load %arg10[%c0_7, %c0_8] : memref<64x128xf32, #tpu.memory_space<vmem>>, vector<64x128xf32>
    tpu.vector_store %arg10[%c0_7, %c0_8], %6 {strides = array<i32>} : memref<64x128xf32, #tpu.memory_space<vmem>>, vector<64x128xf32>,
    %cst_9 = arith.constant 0.000000e+00 : f32
    %8 = vector.broadcast %cst_9 : f32 to vector<8x32xf32>
    %c0_i32 = arith.constant 0 : i32
    %c8_i32 = arith.constant 8 : i32
    %9 = arith.muli %c0_i32, %c8_i32 : i32
    %10 = tpu.assume_multiple %9, 8 : i32
    %11 = arith.index_cast %10 : i32 to index
    %c0_10 = arith.constant 0 : index
    %12 = vector.load %arg10[%11, %c0_10] : memref<64x128xf32, #tpu.memory_space<vmem>>, vector<8x128xf32>
    %cst_11 = arith.constant dense<0.000000e+00> : vector<8x128xf32>
    %13 = tpu.matmul %8, %1, %cst_11 {dimension_numbers = #tpu.dot_dimension_numbers<[1], [0], [0], [1], [0, 0, 1, 1], [], []>} : vector<8x32xf32>, vector<32x128xf32>, vector<8x128xf32> -> vector<8x128xf32>
    %14 = arith.addf %12, %13 : vector<8x128xf32>
    %15 = arith.negf %14 : vector<8x128xf32>
    %16 = math.exp %15 : vector<8x128xf32>
    %cst_12 = arith.constant 1.000000e+00 : f32
    %17 = vector.broadcast %cst_12 : f32 to vector<8x128xf32>
    %18 = arith.addf %17, %16 : vector<8x128xf32>
    %19 = arith.divf %17, %18 : vector<8x128xf32>
    %20 = math.tanh %14 : vector<8x128xf32>
    %21 = vector.extract_strided_slice %19 {offsets = [0, 0], sizes = [8, 32], strides = [1, 1]} : vector<8x128xf32> to vector<8x32xf32>
    %22 = vector.extract_strided_slice %19 {offsets = [0, 32], sizes = [8, 32], strides = [1, 1]} : vector<8x128xf32> to vector<8x32xf32>
    %23 = vector.extract_strided_slice %19 {offsets = [0, 64], sizes = [8, 32], strides = [1, 1]} : vector<8x128xf32> to vector<8x32xf32>
    %24 = vector.extract_strided_slice %20 {offsets = [0, 96], sizes = [8, 32], strides = [1, 1]} : vector<8x128xf32> to vector<8x32xf32>
    %25 = arith.mulf %22, %8 : vector<8x32xf32>
    %26 = arith.mulf %21, %24 : vector<8x32xf32>
    %27 = arith.addf %25, %26 : vector<8x32xf32>
    %28 = math.tanh %27 : vector<8x32xf32>
    %29 = arith.mulf %23, %28 : vector<8x32xf32>
    %30 = arith.index_cast %10 : i32 to index
    %c0_13 = arith.constant 0 : index
    %31 = vector.load %arg11[%30, %c0_13] : memref<64x32xf32, #tpu.memory_space<vmem>>, vector<8x32xf32>
    tpu.vector_store %arg11[%30, %c0_13], %29 {strides = array<i32>} : memref<64x32xf32, #tpu.memory_space<vmem>>, vector<8x32xf32>,
    %c1_i32 = arith.constant 1 : i32
    %c8_i32_14 = arith.constant 8 : i32
    %32 = arith.muli %c1_i32, %c8_i32_14 : i32
    %33 = tpu.assume_multiple %32, 8 : i32
    %34 = arith.index_cast %33 : i32 to index
    %c0_15 = arith.constant 0 : index
    %35 = vector.load %arg10[%34, %c0_15] : memref<64x128xf32, #tpu.memory_space<vmem>>, vector<8x128xf32>
    %cst_16 = arith.constant dense<0.000000e+00> : vector<8x128xf32>
    %36 = tpu.matmul %29, %1, %cst_16 {dimension_numbers = #tpu.dot_dimension_numbers<[1], [0], [0], [1], [0, 0, 1, 1], [], []>} : vector<8x32xf32>, vector<32x128xf32>, vector<8x128xf32> -> vector<8x128xf32>
    %37 = arith.addf %35, %36 : vector<8x128xf32>
    %38 = arith.negf %37 : vector<8x128xf32>
    %39 = math.exp %38 : vector<8x128xf32>
    %cst_17 = arith.constant 1.000000e+00 : f32
    %40 = vector.broadcast %cst_17 : f32 to vector<8x128xf32>
    %41 = arith.addf %40, %39 : vector<8x128xf32>
    %42 = arith.divf %40, %41 : vector<8x128xf32>
    %43 = math.tanh %37 : vector<8x128xf32>
    %44 = vector.extract_strided_slice %42 {offsets = [0, 0], sizes = [8, 32], strides = [1, 1]} : vector<8x128xf32> to vector<8x32xf32>
    %45 = vector.extract_strided_slice %42 {offsets = [0, 32], sizes = [8, 32], strides = [1, 1]} : vector<8x128xf32> to vector<8x32xf32>
    %46 = vector.extract_strided_slice %42 {offsets = [0, 64], sizes = [8, 32], strides = [1, 1]} : vector<8x128xf32> to vector<8x32xf32>
    %47 = vector.extract_strided_slice %43 {offsets = [0, 96], sizes = [8, 32], strides = [1, 1]} : vector<8x128xf32> to vector<8x32xf32>
    %48 = arith.mulf %45, %27 : vector<8x32xf32>
    %49 = arith.mulf %44, %47 : vector<8x32xf32>
    %50 = arith.addf %48, %49 : vector<8x32xf32>
    %51 = math.tanh %50 : vector<8x32xf32>
    %52 = arith.mulf %46, %51 : vector<8x32xf32>
    %53 = arith.index_cast %33 : i32 to index
    %c0_18 = arith.constant 0 : index
    %54 = vector.load %arg11[%53, %c0_18] : memref<64x32xf32, #tpu.memory_space<vmem>>, vector<8x32xf32>
    tpu.vector_store %arg11[%53, %c0_18], %52 {strides = array<i32>} : memref<64x32xf32, #tpu.memory_space<vmem>>, vector<8x32xf32>,
    %c2_i32 = arith.constant 2 : i32
    %c8_i32_19 = arith.constant 8 : i32
    %55 = arith.muli %c2_i32, %c8_i32_19 : i32
    %56 = tpu.assume_multiple %55, 8 : i32
    %57 = arith.index_cast %56 : i32 to index
    %c0_20 = arith.constant 0 : index
    %58 = vector.load %arg10[%57, %c0_20] : memref<64x128xf32, #tpu.memory_space<vmem>>, vector<8x128xf32>
    %cst_21 = arith.constant dense<0.000000e+00> : vector<8x128xf32>
    %59 = tpu.matmul %52, %1, %cst_21 {dimension_numbers = #tpu.dot_dimension_numbers<[1], [0], [0], [1], [0, 0, 1, 1], [], []>} : vector<8x32xf32>, vector<32x128xf32>, vector<8x128xf32> -> vector<8x128xf32>
    %60 = arith.addf %58, %59 : vector<8x128xf32>
    %61 = arith.negf %60 : vector<8x128xf32>
    %62 = math.exp %61 : vector<8x128xf32>
    %cst_22 = arith.constant 1.000000e+00 : f32
    %63 = vector.broadcast %cst_22 : f32 to vector<8x128xf32>
    %64 = arith.addf %63, %62 : vector<8x128xf32>
    %65 = arith.divf %63, %64 : vector<8x128xf32>
    %66 = math.tanh %60 : vector<8x128xf32>
    %67 = vector.extract_strided_slice %65 {offsets = [0, 0], sizes = [8, 32], strides = [1, 1]} : vector<8x128xf32> to vector<8x32xf32>
    %68 = vector.extract_strided_slice %65 {offsets = [0, 32], sizes = [8, 32], strides = [1, 1]} : vector<8x128xf32> to vector<8x32xf32>
    %69 = vector.extract_strided_slice %65 {offsets = [0, 64], sizes = [8, 32], strides = [1, 1]} : vector<8x128xf32> to vector<8x32xf32>
    %70 = vector.extract_strided_slice %66 {offsets = [0, 96], sizes = [8, 32], strides = [1, 1]} : vector<8x128xf32> to vector<8x32xf32>
    %71 = arith.mulf %68, %50 : vector<8x32xf32>
    %72 = arith.mulf %67, %70 : vector<8x32xf32>
    %73 = arith.addf %71, %72 : vector<8x32xf32>
    %74 = math.tanh %73 : vector<8x32xf32>
    %75 = arith.mulf %69, %74 : vector<8x32xf32>
    %76 = arith.index_cast %56 : i32 to index
    %c0_23 = arith.constant 0 : index
    %77 = vector.load %arg11[%76, %c0_23] : memref<64x32xf32, #tpu.memory_space<vmem>>, vector<8x32xf32>
    tpu.vector_store %arg11[%76, %c0_23], %75 {strides = array<i32>} : memref<64x32xf32, #tpu.memory_space<vmem>>, vector<8x32xf32>,
    %c3_i32 = arith.constant 3 : i32
    %c8_i32_24 = arith.constant 8 : i32
    %78 = arith.muli %c3_i32, %c8_i32_24 : i32
    %79 = tpu.assume_multiple %78, 8 : i32
    %80 = arith.index_cast %79 : i32 to index
    %c0_25 = arith.constant 0 : index
    %81 = vector.load %arg10[%80, %c0_25] : memref<64x128xf32, #tpu.memory_space<vmem>>, vector<8x128xf32>
    %cst_26 = arith.constant dense<0.000000e+00> : vector<8x128xf32>
    %82 = tpu.matmul %75, %1, %cst_26 {dimension_numbers = #tpu.dot_dimension_numbers<[1], [0], [0], [1], [0, 0, 1, 1], [], []>} : vector<8x32xf32>, vector<32x128xf32>, vector<8x128xf32> -> vector<8x128xf32>
    %83 = arith.addf %81, %82 : vector<8x128xf32>
    %84 = arith.negf %83 : vector<8x128xf32>
    %85 = math.exp %84 : vector<8x128xf32>
    %cst_27 = arith.constant 1.000000e+00 : f32
    %86 = vector.broadcast %cst_27 : f32 to vector<8x128xf32>
    %87 = arith.addf %86, %85 : vector<8x128xf32>
    %88 = arith.divf %86, %87 : vector<8x128xf32>
    %89 = math.tanh %83 : vector<8x128xf32>
    %90 = vector.extract_strided_slice %88 {offsets = [0, 0], sizes = [8, 32], strides = [1, 1]} : vector<8x128xf32> to vector<8x32xf32>
    %91 = vector.extract_strided_slice %88 {offsets = [0, 32], sizes = [8, 32], strides = [1, 1]} : vector<8x128xf32> to vector<8x32xf32>
    %92 = vector.extract_strided_slice %88 {offsets = [0, 64], sizes = [8, 32], strides = [1, 1]} : vector<8x128xf32> to vector<8x32xf32>
    %93 = vector.extract_strided_slice %89 {offsets = [0, 96], sizes = [8, 32], strides = [1, 1]} : vector<8x128xf32> to vector<8x32xf32>
    %94 = arith.mulf %91, %73 : vector<8x32xf32>
    %95 = arith.mulf %90, %93 : vector<8x32xf32>
    %96 = arith.addf %94, %95 : vector<8x32xf32>
    %97 = math.tanh %96 : vector<8x32xf32>
    %98 = arith.mulf %92, %97 : vector<8x32xf32>
    %99 = arith.index_cast %79 : i32 to index
    %c0_28 = arith.constant 0 : index
    %100 = vector.load %arg11[%99, %c0_28] : memref<64x32xf32, #tpu.memory_space<vmem>>, vector<8x32xf32>
    tpu.vector_store %arg11[%99, %c0_28], %98 {strides = array<i32>} : memref<64x32xf32, #tpu.memory_space<vmem>>, vector<8x32xf32>,
    %c4_i32 = arith.constant 4 : i32
    %c8_i32_29 = arith.constant 8 : i32
    %101 = arith.muli %c4_i32, %c8_i32_29 : i32
    %102 = tpu.assume_multiple %101, 8 : i32
    %103 = arith.index_cast %102 : i32 to index
    %c0_30 = arith.constant 0 : index
    %104 = vector.load %arg10[%103, %c0_30] : memref<64x128xf32, #tpu.memory_space<vmem>>, vector<8x128xf32>
    %cst_31 = arith.constant dense<0.000000e+00> : vector<8x128xf32>
    %105 = tpu.matmul %98, %1, %cst_31 {dimension_numbers = #tpu.dot_dimension_numbers<[1], [0], [0], [1], [0, 0, 1, 1], [], []>} : vector<8x32xf32>, vector<32x128xf32>, vector<8x128xf32> -> vector<8x128xf32>
    %106 = arith.addf %104, %105 : vector<8x128xf32>
    %107 = arith.negf %106 : vector<8x128xf32>
    %108 = math.exp %107 : vector<8x128xf32>
    %cst_32 = arith.constant 1.000000e+00 : f32
    %109 = vector.broadcast %cst_32 : f32 to vector<8x128xf32>
    %110 = arith.addf %109, %108 : vector<8x128xf32>
    %111 = arith.divf %109, %110 : vector<8x128xf32>
    %112 = math.tanh %106 : vector<8x128xf32>
    %113 = vector.extract_strided_slice %111 {offsets = [0, 0], sizes = [8, 32], strides = [1, 1]} : vector<8x128xf32> to vector<8x32xf32>
    %114 = vector.extract_strided_slice %111 {offsets = [0, 32], sizes = [8, 32], strides = [1, 1]} : vector<8x128xf32> to vector<8x32xf32>
    %115 = vector.extract_strided_slice %111 {offsets = [0, 64], sizes = [8, 32], strides = [1, 1]} : vector<8x128xf32> to vector<8x32xf32>
    %116 = vector.extract_strided_slice %112 {offsets = [0, 96], sizes = [8, 32], strides = [1, 1]} : vector<8x128xf32> to vector<8x32xf32>
    %117 = arith.mulf %114, %96 : vector<8x32xf32>
    %118 = arith.mulf %113, %116 : vector<8x32xf32>
    %119 = arith.addf %117, %118 : vector<8x32xf32>
    %120 = math.tanh %119 : vector<8x32xf32>
    %121 = arith.mulf %115, %120 : vector<8x32xf32>
    %122 = arith.index_cast %102 : i32 to index
    %c0_33 = arith.constant 0 : index
    %123 = vector.load %arg11[%122, %c0_33] : memref<64x32xf32, #tpu.memory_space<vmem>>, vector<8x32xf32>
    tpu.vector_store %arg11[%122, %c0_33], %121 {strides = array<i32>} : memref<64x32xf32, #tpu.memory_space<vmem>>, vector<8x32xf32>,
    %c5_i32 = arith.constant 5 : i32
    %c8_i32_34 = arith.constant 8 : i32
    %124 = arith.muli %c5_i32, %c8_i32_34 : i32
    %125 = tpu.assume_multiple %124, 8 : i32
    %126 = arith.index_cast %125 : i32 to index
    %c0_35 = arith.constant 0 : index
    %127 = vector.load %arg10[%126, %c0_35] : memref<64x128xf32, #tpu.memory_space<vmem>>, vector<8x128xf32>
    %cst_36 = arith.constant dense<0.000000e+00> : vector<8x128xf32>
    %128 = tpu.matmul %121, %1, %cst_36 {dimension_numbers = #tpu.dot_dimension_numbers<[1], [0], [0], [1], [0, 0, 1, 1], [], []>} : vector<8x32xf32>, vector<32x128xf32>, vector<8x128xf32> -> vector<8x128xf32>
    %129 = arith.addf %127, %128 : vector<8x128xf32>
    %130 = arith.negf %129 : vector<8x128xf32>
    %131 = math.exp %130 : vector<8x128xf32>
    %cst_37 = arith.constant 1.000000e+00 : f32
    %132 = vector.broadcast %cst_37 : f32 to vector<8x128xf32>
    %133 = arith.addf %132, %131 : vector<8x128xf32>
    %134 = arith.divf %132, %133 : vector<8x128xf32>
    %135 = math.tanh %129 : vector<8x128xf32>
    %136 = vector.extract_strided_slice %134 {offsets = [0, 0], sizes = [8, 32], strides = [1, 1]} : vector<8x128xf32> to vector<8x32xf32>
    %137 = vector.extract_strided_slice %134 {offsets = [0, 32], sizes = [8, 32], strides = [1, 1]} : vector<8x128xf32> to vector<8x32xf32>
    %138 = vector.extract_strided_slice %134 {offsets = [0, 64], sizes = [8, 32], strides = [1, 1]} : vector<8x128xf32> to vector<8x32xf32>
    %139 = vector.extract_strided_slice %135 {offsets = [0, 96], sizes = [8, 32], strides = [1, 1]} : vector<8x128xf32> to vector<8x32xf32>
    %140 = arith.mulf %137, %119 : vector<8x32xf32>
    %141 = arith.mulf %136, %139 : vector<8x32xf32>
    %142 = arith.addf %140, %141 : vector<8x32xf32>
    %143 = math.tanh %142 : vector<8x32xf32>
    %144 = arith.mulf %138, %143 : vector<8x32xf32>
    %145 = arith.index_cast %125 : i32 to index
    %c0_38 = arith.constant 0 : index
    %146 = vector.load %arg11[%145, %c0_38] : memref<64x32xf32, #tpu.memory_space<vmem>>, vector<8x32xf32>
    tpu.vector_store %arg11[%145, %c0_38], %144 {strides = array<i32>} : memref<64x32xf32, #tpu.memory_space<vmem>>, vector<8x32xf32>,
    %c6_i32 = arith.constant 6 : i32
    %c8_i32_39 = arith.constant 8 : i32
    %147 = arith.muli %c6_i32, %c8_i32_39 : i32
    %148 = tpu.assume_multiple %147, 8 : i32
    %149 = arith.index_cast %148 : i32 to index
    %c0_40 = arith.constant 0 : index
    %150 = vector.load %arg10[%149, %c0_40] : memref<64x128xf32, #tpu.memory_space<vmem>>, vector<8x128xf32>
    %cst_41 = arith.constant dense<0.000000e+00> : vector<8x128xf32>
    %151 = tpu.matmul %144, %1, %cst_41 {dimension_numbers = #tpu.dot_dimension_numbers<[1], [0], [0], [1], [0, 0, 1, 1], [], []>} : vector<8x32xf32>, vector<32x128xf32>, vector<8x128xf32> -> vector<8x128xf32>
    %152 = arith.addf %150, %151 : vector<8x128xf32>
    %153 = arith.negf %152 : vector<8x128xf32>
    %154 = math.exp %153 : vector<8x128xf32>
    %cst_42 = arith.constant 1.000000e+00 : f32
    %155 = vector.broadcast %cst_42 : f32 to vector<8x128xf32>
    %156 = arith.addf %155, %154 : vector<8x128xf32>
    %157 = arith.divf %155, %156 : vector<8x128xf32>
    %158 = math.tanh %152 : vector<8x128xf32>
    %159 = vector.extract_strided_slice %157 {offsets = [0, 0], sizes = [8, 32], strides = [1, 1]} : vector<8x128xf32> to vector<8x32xf32>
    %160 = vector.extract_strided_slice %157 {offsets = [0, 32], sizes = [8, 32], strides = [1, 1]} : vector<8x128xf32> to vector<8x32xf32>
    %161 = vector.extract_strided_slice %157 {offsets = [0, 64], sizes = [8, 32], strides = [1, 1]} : vector<8x128xf32> to vector<8x32xf32>
    %162 = vector.extract_strided_slice %158 {offsets = [0, 96], sizes = [8, 32], strides = [1, 1]} : vector<8x128xf32> to vector<8x32xf32>
    %163 = arith.mulf %160, %142 : vector<8x32xf32>
    %164 = arith.mulf %159, %162 : vector<8x32xf32>
    %165 = arith.addf %163, %164 : vector<8x32xf32>
    %166 = math.tanh %165 : vector<8x32xf32>
    %167 = arith.mulf %161, %166 : vector<8x32xf32>
    %168 = arith.index_cast %148 : i32 to index
    %c0_43 = arith.constant 0 : index
    %169 = vector.load %arg11[%168, %c0_43] : memref<64x32xf32, #tpu.memory_space<vmem>>, vector<8x32xf32>
    tpu.vector_store %arg11[%168, %c0_43], %167 {strides = array<i32>} : memref<64x32xf32, #tpu.memory_space<vmem>>, vector<8x32xf32>,
    %c7_i32 = arith.constant 7 : i32
    %c8_i32_44 = arith.constant 8 : i32
    %170 = arith.muli %c7_i32, %c8_i32_44 : i32
    %171 = tpu.assume_multiple %170, 8 : i32
    %172 = arith.index_cast %171 : i32 to index
    %c0_45 = arith.constant 0 : index
    %173 = vector.load %arg10[%172, %c0_45] : memref<64x128xf32, #tpu.memory_space<vmem>>, vector<8x128xf32>
    %cst_46 = arith.constant dense<0.000000e+00> : vector<8x128xf32>
    %174 = tpu.matmul %167, %1, %cst_46 {dimension_numbers = #tpu.dot_dimension_numbers<[1], [0], [0], [1], [0, 0, 1, 1], [], []>} : vector<8x32xf32>, vector<32x128xf32>, vector<8x128xf32> -> vector<8x128xf32>
    %175 = arith.addf %173, %174 : vector<8x128xf32>
    %176 = arith.negf %175 : vector<8x128xf32>
    %177 = math.exp %176 : vector<8x128xf32>
    %cst_47 = arith.constant 1.000000e+00 : f32
    %178 = vector.broadcast %cst_47 : f32 to vector<8x128xf32>
    %179 = arith.addf %178, %177 : vector<8x128xf32>
    %180 = arith.divf %178, %179 : vector<8x128xf32>
    %181 = math.tanh %175 : vector<8x128xf32>
    %182 = vector.extract_strided_slice %180 {offsets = [0, 0], sizes = [8, 32], strides = [1, 1]} : vector<8x128xf32> to vector<8x32xf32>
    %183 = vector.extract_strided_slice %180 {offsets = [0, 32], sizes = [8, 32], strides = [1, 1]} : vector<8x128xf32> to vector<8x32xf32>
    %184 = vector.extract_strided_slice %180 {offsets = [0, 64], sizes = [8, 32], strides = [1, 1]} : vector<8x128xf32> to vector<8x32xf32>
    %185 = vector.extract_strided_slice %181 {offsets = [0, 96], sizes = [8, 32], strides = [1, 1]} : vector<8x128xf32> to vector<8x32xf32>
    %186 = arith.mulf %183, %165 : vector<8x32xf32>
    %187 = arith.mulf %182, %185 : vector<8x32xf32>
    %188 = arith.addf %186, %187 : vector<8x32xf32>
    %189 = math.tanh %188 : vector<8x32xf32>
    %190 = arith.mulf %184, %189 : vector<8x32xf32>
    %191 = arith.index_cast %171 : i32 to index
    %c0_48 = arith.constant 0 : index
    %192 = vector.load %arg11[%191, %c0_48] : memref<64x32xf32, #tpu.memory_space<vmem>>, vector<8x32xf32>
    tpu.vector_store %arg11[%191, %c0_48], %190 {strides = array<i32>} : memref<64x32xf32, #tpu.memory_space<vmem>>, vector<8x32xf32>,
    %c8_i32_49 = arith.constant 8 : i32
    %c0_50 = arith.constant 0 : index
    %c0_51 = arith.constant 0 : index
    %193 = vector.load %arg4[%c0_50, %c0_51] : memref<32x128xf32, #tpu.memory_space<vmem>>, vector<32x128xf32>
    %c0_52 = arith.constant 0 : index
    %c0_53 = arith.constant 0 : index
    %194 = vector.load %arg5[%c0_52, %c0_53] : memref<32x128xf32, #tpu.memory_space<vmem>>, vector<32x128xf32>
    %c0_54 = arith.constant 0 : index
    %c0_55 = arith.constant 0 : index
    %195 = vector.load %arg6[%c0_54, %c0_55] : memref<1x128xf32, #tpu.memory_space<vmem>>, vector<1x128xf32>
    %c0_56 = arith.constant 0 : index
    %c0_57 = arith.constant 0 : index
    %196 = vector.load %arg11[%c0_56, %c0_57] : memref<64x32xf32, #tpu.memory_space<vmem>>, vector<64x32xf32>
    %cst_58 = arith.constant dense<0.000000e+00> : vector<64x128xf32>
    %197 = tpu.matmul %196, %193, %cst_58 {dimension_numbers = #tpu.dot_dimension_numbers<[1], [0], [0], [1], [0, 0, 1, 1], [], []>} : vector<64x32xf32>, vector<32x128xf32>, vector<64x128xf32> -> vector<64x128xf32>
    %198 = vector.broadcast %195 : vector<1x128xf32> to vector<64x128xf32>
    %199 = arith.addf %197, %198 : vector<64x128xf32>
    %c0_59 = arith.constant 0 : index
    %c0_60 = arith.constant 0 : index
    %200 = vector.load %arg10[%c0_59, %c0_60] : memref<64x128xf32, #tpu.memory_space<vmem>>, vector<64x128xf32>
    tpu.vector_store %arg10[%c0_59, %c0_60], %199 {strides = array<i32>} : memref<64x128xf32, #tpu.memory_space<vmem>>, vector<64x128xf32>,
    %cst_61 = arith.constant 0.000000e+00 : f32
    %201 = vector.broadcast %cst_61 : f32 to vector<8x32xf32>
    %c0_i32_62 = arith.constant 0 : i32
    %c8_i32_63 = arith.constant 8 : i32
    %202 = arith.muli %c0_i32_62, %c8_i32_63 : i32
    %203 = tpu.assume_multiple %202, 8 : i32
    %204 = arith.index_cast %203 : i32 to index
    %c0_64 = arith.constant 0 : index
    %205 = vector.load %arg10[%204, %c0_64] : memref<64x128xf32, #tpu.memory_space<vmem>>, vector<8x128xf32>
    %cst_65 = arith.constant dense<0.000000e+00> : vector<8x128xf32>
    %206 = tpu.matmul %201, %194, %cst_65 {dimension_numbers = #tpu.dot_dimension_numbers<[1], [0], [0], [1], [0, 0, 1, 1], [], []>} : vector<8x32xf32>, vector<32x128xf32>, vector<8x128xf32> -> vector<8x128xf32>
    %207 = arith.addf %205, %206 : vector<8x128xf32>
    %208 = arith.negf %207 : vector<8x128xf32>
    %209 = math.exp %208 : vector<8x128xf32>
    %cst_66 = arith.constant 1.000000e+00 : f32
    %210 = vector.broadcast %cst_66 : f32 to vector<8x128xf32>
    %211 = arith.addf %210, %209 : vector<8x128xf32>
    %212 = arith.divf %210, %211 : vector<8x128xf32>
    %213 = math.tanh %207 : vector<8x128xf32>
    %214 = vector.extract_strided_slice %212 {offsets = [0, 0], sizes = [8, 32], strides = [1, 1]} : vector<8x128xf32> to vector<8x32xf32>
    %215 = vector.extract_strided_slice %212 {offsets = [0, 32], sizes = [8, 32], strides = [1, 1]} : vector<8x128xf32> to vector<8x32xf32>
    %216 = vector.extract_strided_slice %212 {offsets = [0, 64], sizes = [8, 32], strides = [1, 1]} : vector<8x128xf32> to vector<8x32xf32>
    %217 = vector.extract_strided_slice %213 {offsets = [0, 96], sizes = [8, 32], strides = [1, 1]} : vector<8x128xf32> to vector<8x32xf32>
    %218 = arith.mulf %215, %201 : vector<8x32xf32>
    %219 = arith.mulf %214, %217 : vector<8x32xf32>
    %220 = arith.addf %218, %219 : vector<8x32xf32>
    %221 = math.tanh %220 : vector<8x32xf32>
    %222 = arith.mulf %216, %221 : vector<8x32xf32>
    %c1_i32_67 = arith.constant 1 : i32
    %c8_i32_68 = arith.constant 8 : i32
    %223 = arith.muli %c1_i32_67, %c8_i32_68 : i32
    %224 = tpu.assume_multiple %223, 8 : i32
    %225 = arith.index_cast %224 : i32 to index
    %c0_69 = arith.constant 0 : index
    %226 = vector.load %arg10[%225, %c0_69] : memref<64x128xf32, #tpu.memory_space<vmem>>, vector<8x128xf32>
    %cst_70 = arith.constant dense<0.000000e+00> : vector<8x128xf32>
    %227 = tpu.matmul %222, %194, %cst_70 {dimension_numbers = #tpu.dot_dimension_numbers<[1], [0], [0], [1], [0, 0, 1, 1], [], []>} : vector<8x32xf32>, vector<32x128xf32>, vector<8x128xf32> -> vector<8x128xf32>
    %228 = arith.addf %226, %227 : vector<8x128xf32>
    %229 = arith.negf %228 : vector<8x128xf32>
    %230 = math.exp %229 : vector<8x128xf32>
    %cst_71 = arith.constant 1.000000e+00 : f32
    %231 = vector.broadcast %cst_71 : f32 to vector<8x128xf32>
    %232 = arith.addf %231, %230 : vector<8x128xf32>
    %233 = arith.divf %231, %232 : vector<8x128xf32>
    %234 = math.tanh %228 : vector<8x128xf32>
    %235 = vector.extract_strided_slice %233 {offsets = [0, 0], sizes = [8, 32], strides = [1, 1]} : vector<8x128xf32> to vector<8x32xf32>
    %236 = vector.extract_strided_slice %233 {offsets = [0, 32], sizes = [8, 32], strides = [1, 1]} : vector<8x128xf32> to vector<8x32xf32>
    %237 = vector.extract_strided_slice %233 {offsets = [0, 64], sizes = [8, 32], strides = [1, 1]} : vector<8x128xf32> to vector<8x32xf32>
    %238 = vector.extract_strided_slice %234 {offsets = [0, 96], sizes = [8, 32], strides = [1, 1]} : vector<8x128xf32> to vector<8x32xf32>
    %239 = arith.mulf %236, %220 : vector<8x32xf32>
    %240 = arith.mulf %235, %238 : vector<8x32xf32>
    %241 = arith.addf %239, %240 : vector<8x32xf32>
    %242 = math.tanh %241 : vector<8x32xf32>
    %243 = arith.mulf %237, %242 : vector<8x32xf32>
    %c2_i32_72 = arith.constant 2 : i32
    %c8_i32_73 = arith.constant 8 : i32
    %244 = arith.muli %c2_i32_72, %c8_i32_73 : i32
    %245 = tpu.assume_multiple %244, 8 : i32
    %246 = arith.index_cast %245 : i32 to index
    %c0_74 = arith.constant 0 : index
    %247 = vector.load %arg10[%246, %c0_74] : memref<64x128xf32, #tpu.memory_space<vmem>>, vector<8x128xf32>
    %cst_75 = arith.constant dense<0.000000e+00> : vector<8x128xf32>
    %248 = tpu.matmul %243, %194, %cst_75 {dimension_numbers = #tpu.dot_dimension_numbers<[1], [0], [0], [1], [0, 0, 1, 1], [], []>} : vector<8x32xf32>, vector<32x128xf32>, vector<8x128xf32> -> vector<8x128xf32>
    %249 = arith.addf %247, %248 : vector<8x128xf32>
    %250 = arith.negf %249 : vector<8x128xf32>
    %251 = math.exp %250 : vector<8x128xf32>
    %cst_76 = arith.constant 1.000000e+00 : f32
    %252 = vector.broadcast %cst_76 : f32 to vector<8x128xf32>
    %253 = arith.addf %252, %251 : vector<8x128xf32>
    %254 = arith.divf %252, %253 : vector<8x128xf32>
    %255 = math.tanh %249 : vector<8x128xf32>
    %256 = vector.extract_strided_slice %254 {offsets = [0, 0], sizes = [8, 32], strides = [1, 1]} : vector<8x128xf32> to vector<8x32xf32>
    %257 = vector.extract_strided_slice %254 {offsets = [0, 32], sizes = [8, 32], strides = [1, 1]} : vector<8x128xf32> to vector<8x32xf32>
    %258 = vector.extract_strided_slice %254 {offsets = [0, 64], sizes = [8, 32], strides = [1, 1]} : vector<8x128xf32> to vector<8x32xf32>
    %259 = vector.extract_strided_slice %255 {offsets = [0, 96], sizes = [8, 32], strides = [1, 1]} : vector<8x128xf32> to vector<8x32xf32>
    %260 = arith.mulf %257, %241 : vector<8x32xf32>
    %261 = arith.mulf %256, %259 : vector<8x32xf32>
    %262 = arith.addf %260, %261 : vector<8x32xf32>
    %263 = math.tanh %262 : vector<8x32xf32>
    %264 = arith.mulf %258, %263 : vector<8x32xf32>
    %c3_i32_77 = arith.constant 3 : i32
    %c8_i32_78 = arith.constant 8 : i32
    %265 = arith.muli %c3_i32_77, %c8_i32_78 : i32
    %266 = tpu.assume_multiple %265, 8 : i32
    %267 = arith.index_cast %266 : i32 to index
    %c0_79 = arith.constant 0 : index
    %268 = vector.load %arg10[%267, %c0_79] : memref<64x128xf32, #tpu.memory_space<vmem>>, vector<8x128xf32>
    %cst_80 = arith.constant dense<0.000000e+00> : vector<8x128xf32>
    %269 = tpu.matmul %264, %194, %cst_80 {dimension_numbers = #tpu.dot_dimension_numbers<[1], [0], [0], [1], [0, 0, 1, 1], [], []>} : vector<8x32xf32>, vector<32x128xf32>, vector<8x128xf32> -> vector<8x128xf32>
    %270 = arith.addf %268, %269 : vector<8x128xf32>
    %271 = arith.negf %270 : vector<8x128xf32>
    %272 = math.exp %271 : vector<8x128xf32>
    %cst_81 = arith.constant 1.000000e+00 : f32
    %273 = vector.broadcast %cst_81 : f32 to vector<8x128xf32>
    %274 = arith.addf %273, %272 : vector<8x128xf32>
    %275 = arith.divf %273, %274 : vector<8x128xf32>
    %276 = math.tanh %270 : vector<8x128xf32>
    %277 = vector.extract_strided_slice %275 {offsets = [0, 0], sizes = [8, 32], strides = [1, 1]} : vector<8x128xf32> to vector<8x32xf32>
    %278 = vector.extract_strided_slice %275 {offsets = [0, 32], sizes = [8, 32], strides = [1, 1]} : vector<8x128xf32> to vector<8x32xf32>
    %279 = vector.extract_strided_slice %275 {offsets = [0, 64], sizes = [8, 32], strides = [1, 1]} : vector<8x128xf32> to vector<8x32xf32>
    %280 = vector.extract_strided_slice %276 {offsets = [0, 96], sizes = [8, 32], strides = [1, 1]} : vector<8x128xf32> to vector<8x32xf32>
    %281 = arith.mulf %278, %262 : vector<8x32xf32>
    %282 = arith.mulf %277, %280 : vector<8x32xf32>
    %283 = arith.addf %281, %282 : vector<8x32xf32>
    %284 = math.tanh %283 : vector<8x32xf32>
    %285 = arith.mulf %279, %284 : vector<8x32xf32>
    %c4_i32_82 = arith.constant 4 : i32
    %c8_i32_83 = arith.constant 8 : i32
    %286 = arith.muli %c4_i32_82, %c8_i32_83 : i32
    %287 = tpu.assume_multiple %286, 8 : i32
    %288 = arith.index_cast %287 : i32 to index
    %c0_84 = arith.constant 0 : index
    %289 = vector.load %arg10[%288, %c0_84] : memref<64x128xf32, #tpu.memory_space<vmem>>, vector<8x128xf32>
    %cst_85 = arith.constant dense<0.000000e+00> : vector<8x128xf32>
    %290 = tpu.matmul %285, %194, %cst_85 {dimension_numbers = #tpu.dot_dimension_numbers<[1], [0], [0], [1], [0, 0, 1, 1], [], []>} : vector<8x32xf32>, vector<32x128xf32>, vector<8x128xf32> -> vector<8x128xf32>
    %291 = arith.addf %289, %290 : vector<8x128xf32>
    %292 = arith.negf %291 : vector<8x128xf32>
    %293 = math.exp %292 : vector<8x128xf32>
    %cst_86 = arith.constant 1.000000e+00 : f32
    %294 = vector.broadcast %cst_86 : f32 to vector<8x128xf32>
    %295 = arith.addf %294, %293 : vector<8x128xf32>
    %296 = arith.divf %294, %295 : vector<8x128xf32>
    %297 = math.tanh %291 : vector<8x128xf32>
    %298 = vector.extract_strided_slice %296 {offsets = [0, 0], sizes = [8, 32], strides = [1, 1]} : vector<8x128xf32> to vector<8x32xf32>
    %299 = vector.extract_strided_slice %296 {offsets = [0, 32], sizes = [8, 32], strides = [1, 1]} : vector<8x128xf32> to vector<8x32xf32>
    %300 = vector.extract_strided_slice %296 {offsets = [0, 64], sizes = [8, 32], strides = [1, 1]} : vector<8x128xf32> to vector<8x32xf32>
    %301 = vector.extract_strided_slice %297 {offsets = [0, 96], sizes = [8, 32], strides = [1, 1]} : vector<8x128xf32> to vector<8x32xf32>
    %302 = arith.mulf %299, %283 : vector<8x32xf32>
    %303 = arith.mulf %298, %301 : vector<8x32xf32>
    %304 = arith.addf %302, %303 : vector<8x32xf32>
    %305 = math.tanh %304 : vector<8x32xf32>
    %306 = arith.mulf %300, %305 : vector<8x32xf32>
    %c5_i32_87 = arith.constant 5 : i32
    %c8_i32_88 = arith.constant 8 : i32
    %307 = arith.muli %c5_i32_87, %c8_i32_88 : i32
    %308 = tpu.assume_multiple %307, 8 : i32
    %309 = arith.index_cast %308 : i32 to index
    %c0_89 = arith.constant 0 : index
    %310 = vector.load %arg10[%309, %c0_89] : memref<64x128xf32, #tpu.memory_space<vmem>>, vector<8x128xf32>
    %cst_90 = arith.constant dense<0.000000e+00> : vector<8x128xf32>
    %311 = tpu.matmul %306, %194, %cst_90 {dimension_numbers = #tpu.dot_dimension_numbers<[1], [0], [0], [1], [0, 0, 1, 1], [], []>} : vector<8x32xf32>, vector<32x128xf32>, vector<8x128xf32> -> vector<8x128xf32>
    %312 = arith.addf %310, %311 : vector<8x128xf32>
    %313 = arith.negf %312 : vector<8x128xf32>
    %314 = math.exp %313 : vector<8x128xf32>
    %cst_91 = arith.constant 1.000000e+00 : f32
    %315 = vector.broadcast %cst_91 : f32 to vector<8x128xf32>
    %316 = arith.addf %315, %314 : vector<8x128xf32>
    %317 = arith.divf %315, %316 : vector<8x128xf32>
    %318 = math.tanh %312 : vector<8x128xf32>
    %319 = vector.extract_strided_slice %317 {offsets = [0, 0], sizes = [8, 32], strides = [1, 1]} : vector<8x128xf32> to vector<8x32xf32>
    %320 = vector.extract_strided_slice %317 {offsets = [0, 32], sizes = [8, 32], strides = [1, 1]} : vector<8x128xf32> to vector<8x32xf32>
    %321 = vector.extract_strided_slice %317 {offsets = [0, 64], sizes = [8, 32], strides = [1, 1]} : vector<8x128xf32> to vector<8x32xf32>
    %322 = vector.extract_strided_slice %318 {offsets = [0, 96], sizes = [8, 32], strides = [1, 1]} : vector<8x128xf32> to vector<8x32xf32>
    %323 = arith.mulf %320, %304 : vector<8x32xf32>
    %324 = arith.mulf %319, %322 : vector<8x32xf32>
    %325 = arith.addf %323, %324 : vector<8x32xf32>
    %326 = math.tanh %325 : vector<8x32xf32>
    %327 = arith.mulf %321, %326 : vector<8x32xf32>
    %c6_i32_92 = arith.constant 6 : i32
    %c8_i32_93 = arith.constant 8 : i32
    %328 = arith.muli %c6_i32_92, %c8_i32_93 : i32
    %329 = tpu.assume_multiple %328, 8 : i32
    %330 = arith.index_cast %329 : i32 to index
    %c0_94 = arith.constant 0 : index
    %331 = vector.load %arg10[%330, %c0_94] : memref<64x128xf32, #tpu.memory_space<vmem>>, vector<8x128xf32>
    %cst_95 = arith.constant dense<0.000000e+00> : vector<8x128xf32>
    %332 = tpu.matmul %327, %194, %cst_95 {dimension_numbers = #tpu.dot_dimension_numbers<[1], [0], [0], [1], [0, 0, 1, 1], [], []>} : vector<8x32xf32>, vector<32x128xf32>, vector<8x128xf32> -> vector<8x128xf32>
    %333 = arith.addf %331, %332 : vector<8x128xf32>
    %334 = arith.negf %333 : vector<8x128xf32>
    %335 = math.exp %334 : vector<8x128xf32>
    %cst_96 = arith.constant 1.000000e+00 : f32
    %336 = vector.broadcast %cst_96 : f32 to vector<8x128xf32>
    %337 = arith.addf %336, %335 : vector<8x128xf32>
    %338 = arith.divf %336, %337 : vector<8x128xf32>
    %339 = math.tanh %333 : vector<8x128xf32>
    %340 = vector.extract_strided_slice %338 {offsets = [0, 0], sizes = [8, 32], strides = [1, 1]} : vector<8x128xf32> to vector<8x32xf32>
    %341 = vector.extract_strided_slice %338 {offsets = [0, 32], sizes = [8, 32], strides = [1, 1]} : vector<8x128xf32> to vector<8x32xf32>
    %342 = vector.extract_strided_slice %338 {offsets = [0, 64], sizes = [8, 32], strides = [1, 1]} : vector<8x128xf32> to vector<8x32xf32>
    %343 = vector.extract_strided_slice %339 {offsets = [0, 96], sizes = [8, 32], strides = [1, 1]} : vector<8x128xf32> to vector<8x32xf32>
    %344 = arith.mulf %341, %325 : vector<8x32xf32>
    %345 = arith.mulf %340, %343 : vector<8x32xf32>
    %346 = arith.addf %344, %345 : vector<8x32xf32>
    %347 = math.tanh %346 : vector<8x32xf32>
    %348 = arith.mulf %342, %347 : vector<8x32xf32>
    %c7_i32_97 = arith.constant 7 : i32
    %c8_i32_98 = arith.constant 8 : i32
    %349 = arith.muli %c7_i32_97, %c8_i32_98 : i32
    %350 = tpu.assume_multiple %349, 8 : i32
    %351 = arith.index_cast %350 : i32 to index
    %c0_99 = arith.constant 0 : index
    %352 = vector.load %arg10[%351, %c0_99] : memref<64x128xf32, #tpu.memory_space<vmem>>, vector<8x128xf32>
    %cst_100 = arith.constant dense<0.000000e+00> : vector<8x128xf32>
    %353 = tpu.matmul %348, %194, %cst_100 {dimension_numbers = #tpu.dot_dimension_numbers<[1], [0], [0], [1], [0, 0, 1, 1], [], []>} : vector<8x32xf32>, vector<32x128xf32>, vector<8x128xf32> -> vector<8x128xf32>
    %354 = arith.addf %352, %353 : vector<8x128xf32>
    %355 = arith.negf %354 : vector<8x128xf32>
    %356 = math.exp %355 : vector<8x128xf32>
    %cst_101 = arith.constant 1.000000e+00 : f32
    %357 = vector.broadcast %cst_101 : f32 to vector<8x128xf32>
    %358 = arith.addf %357, %356 : vector<8x128xf32>
    %359 = arith.divf %357, %358 : vector<8x128xf32>
    %360 = math.tanh %354 : vector<8x128xf32>
    %361 = vector.extract_strided_slice %359 {offsets = [0, 0], sizes = [8, 32], strides = [1, 1]} : vector<8x128xf32> to vector<8x32xf32>
    %362 = vector.extract_strided_slice %359 {offsets = [0, 32], sizes = [8, 32], strides = [1, 1]} : vector<8x128xf32> to vector<8x32xf32>
    %363 = vector.extract_strided_slice %359 {offsets = [0, 64], sizes = [8, 32], strides = [1, 1]} : vector<8x128xf32> to vector<8x32xf32>
    %364 = vector.extract_strided_slice %360 {offsets = [0, 96], sizes = [8, 32], strides = [1, 1]} : vector<8x128xf32> to vector<8x32xf32>
    %365 = arith.mulf %362, %346 : vector<8x32xf32>
    %366 = arith.mulf %361, %364 : vector<8x32xf32>
    %367 = arith.addf %365, %366 : vector<8x32xf32>
    %368 = math.tanh %367 : vector<8x32xf32>
    %369 = arith.mulf %363, %368 : vector<8x32xf32>
    %c8_i32_102 = arith.constant 8 : i32
    %c0_103 = arith.constant 0 : index
    %c0_104 = arith.constant 0 : index
    %370 = vector.load %arg7[%c0_103, %c0_104] : memref<32x128xf32, #tpu.memory_space<vmem>>, vector<32x128xf32>
    %cst_105 = arith.constant dense<0.000000e+00> : vector<8x128xf32>
    %371 = tpu.matmul %369, %370, %cst_105 {dimension_numbers = #tpu.dot_dimension_numbers<[1], [0], [0], [1], [0, 0, 1, 1], [], []>} : vector<8x32xf32>, vector<32x128xf32>, vector<8x128xf32> -> vector<8x128xf32>
    %c0_106 = arith.constant 0 : index
    %c0_107 = arith.constant 0 : index
    %372 = vector.load %arg8[%c0_106, %c0_107] : memref<1x128xf32, #tpu.memory_space<vmem>>, vector<1x128xf32>
    %373 = vector.broadcast %372 : vector<1x128xf32> to vector<8x128xf32>
    %374 = arith.addf %371, %373 : vector<8x128xf32>
    %c0_108 = arith.constant 0 : index
    %c0_109 = arith.constant 0 : index
    %375 = vector.load %arg9[%c0_108, %c0_109] : memref<8x128xf32, #tpu.memory_space<vmem>>, vector<8x128xf32>
    tpu.vector_store %arg9[%c0_108, %c0_109], %374 {strides = array<i32>} : memref<8x128xf32, #tpu.memory_space<vmem>>, vector<8x128xf32>,
    return
  }
}

</mosaic_0001>

<llo_original>
// kernel: tpu_custom_call.1
$region0: #{tpu_custom_call.1}
  #allocation0 [shape = 'u32[]', space=smem, size = 0x4, offset = 0x4, fixed_abs, tag = 'smem constant byte address 0x4 - core index']
  #allocation1 [shape = 'u32[144,128]{1,0:T(1,128)}', space=vmem, size = 0x12000, scoped, tag = 'internal scratch']
  #allocation2 [shape = 'f32[64,128]{1,0:T(8,128)}', space=vmem, size = 0x8000, scoped, tag = 'scratch operand']
  #allocation3 [shape = 'f32[64,32]{1,0:T(8,128)}', space=vmem, size = 0x8000, scoped, tag = 'scratch operand']
  %s0 = inlined_call_operand.vmem [shape: f32[64,4], index: 0, kind: input, shape index: {}]
  %s1 = inlined_call_operand.vmem [shape: f32[4,128], index: 1, kind: input, shape index: {}]
  %s2 = inlined_call_operand.vmem [shape: f32[32,128], index: 2, kind: input, shape index: {}]
  %s3 = inlined_call_operand.vmem [shape: f32[1,128], index: 3, kind: input, shape index: {}]
  %s4 = inlined_call_operand.vmem [shape: f32[32,128], index: 4, kind: input, shape index: {}]
  %s5 = inlined_call_operand.hbm [shape: f32[32,128], index: 5, kind: input, shape index: {}]
  %s6 = inlined_call_operand.vmem [shape: f32[1,128], index: 6, kind: input, shape index: {}]
  %s7 = inlined_call_operand.hbm [shape: f32[32,128], index: 7, kind: input, shape index: {}]
  %s8 = inlined_call_operand.vmem [shape: f32[1,128], index: 8, kind: input, shape index: {}]
  %s9 = inlined_call_operand.hbm [shape: f32[8,128], index: 9, kind: output, shape index: {}]
  %s10 = sld [smem:[#allocation0]]
  $region54: #{tpu_custom_call.1} parent=0
    _
  %s12 = ssub.s32 1, %s10
  %s13 = scalar_select 0, %s12, %s10
  $region1: #{tpu_custom_call.1} parent=0
    #allocation4 [shape = 'u8[16384]{0}', space=vmem, size = 0x4000, scoped, tag = 'input window, operand 5, single buffered']
    #allocation5 [shape = 's32[1]{0}', space=sflag, size = 0x4, scoped, tag = 'scoped memory for tpu_custom_call.1']
    #allocation6 [shape = 's32[1]{0}', space=sflag, size = 0x4, scoped, tag = 'scoped memory for tpu_custom_call.1']
    #allocation7 [shape = 'u8[16384]{0}', space=vmem, size = 0x4000, scoped, tag = 'input window, operand 7, single buffered']
    #allocation8 [shape = 's32[1]{0}', space=sflag, size = 0x4, scoped, tag = 'scoped memory for tpu_custom_call.1']
    #allocation9 [shape = 'u8[4096]{0}', space=vmem, size = 0x1000, scoped, tag = 'output window, operand 0, single buffered']
    %14 = vsyncpa [#allocation5], 0
    %15 = vsyncpa [#allocation8], 0
    %16 = vsyncpa [#allocation6], 0
    // Predicated region
    $region2: #{tpu_custom_call.1} parent=1 // pred_check
      _
    $region3: #{tpu_custom_call.1} parent=1 // pred_check_branch
      %18 = sbr.rel (0) target = $region5
    $region4: #{tpu_custom_call.1} parent=1 // pred_region
      _
    $region5: #{tpu_custom_call.1} parent=1 // pred_fallthru
      _
    // Predicated region
    $region6: #{tpu_custom_call.1} parent=1 // pred_check
      _
    $region7: #{tpu_custom_call.1} parent=1 // pred_check_branch
      %20 = sbr.rel (0) target = $region9
    $region8: #{tpu_custom_call.1} parent=1 // pred_region
      _
    $region9: #{tpu_custom_call.1} parent=1 // pred_fallthru
      _
    // Predicated region
    $region10: #{tpu_custom_call.1} parent=1 // pred_check
      _
    $region11: #{tpu_custom_call.1} parent=1 // pred_check_branch
      %22 = sbr.rel (0) target = $region13
    $region12: #{tpu_custom_call.1} parent=1 // pred_region
      _
    $region13: #{tpu_custom_call.1} parent=1 // pred_fallthru
      _
    // Predicated region
    $region14: #{tpu_custom_call.1} parent=1 // pred_check
      _
    $region15: #{tpu_custom_call.1} parent=1 // pred_check_branch
      %24 = sbr.rel (0) target = $region17
    $region16: #{tpu_custom_call.1} parent=1 // pred_region
      _
    $region17: #{tpu_custom_call.1} parent=1 // pred_fallthru
      _
    // Predicated region
    $region18: #{tpu_custom_call.1} parent=1 // pred_check
      _
    $region19: #{tpu_custom_call.1} parent=1 // pred_check_branch
      %26 = sbr.rel (0) target = $region21
    $region20: #{tpu_custom_call.1} parent=1 // pred_region
      _
    $region21: #{tpu_custom_call.1} parent=1 // pred_fallthru
      _
    // Predicated region
    $region22: #{tpu_custom_call.1} parent=1 // pred_check
      _
    $region23: #{tpu_custom_call.1} parent=1 // pred_check_branch
      %28 = sbr.rel (0) target = $region25
    $region24: #{tpu_custom_call.1} parent=1 // pred_region
      %s30 = ssub.s32 512, 512
      %31 = vsyncadd [#allocation5], %s30
      %s32 = sshll.u32 [#allocation4], 4
      %s33 = int_to_ptr.vmem [resolvable:$true] %s32
      %38 = dma.hbm_to_vmem [thread:$0]  %s5, 512, %s33, [#allocation5], 128, 128, 8
    $region25: #{tpu_custom_call.1} parent=1 // pred_fallthru
      _
    // Predicated region
    $region26: #{tpu_custom_call.1} parent=1 // pred_check
      _
    $region27: #{tpu_custom_call.1} parent=1 // pred_check_branch
      %40 = sbr.rel (0) target = $region29
    $region28: #{tpu_custom_call.1} parent=1 // pred_region
      _
    $region29: #{tpu_custom_call.1} parent=1 // pred_fallthru
      _
    // Predicated region
    $region30: #{tpu_custom_call.1} parent=1 // pred_check
      _
    $region31: #{tpu_custom_call.1} parent=1 // pred_check_branch
      %42 = sbr.rel (0) target = $region33
    $region32: #{tpu_custom_call.1} parent=1 // pred_region
      %s44 = ssub.s32 512, 512
      %45 = vsyncadd [#allocation8], %s44
      %s46 = sshll.u32 [#allocation7], 4
      %s47 = int_to_ptr.vmem [resolvable:$true] %s46
      %52 = dma.hbm_to_vmem [thread:$0]  %s7, 512, %s47, [#allocation8], 128, 128, 8
    $region33: #{tpu_custom_call.1} parent=1 // pred_fallthru
      _
    // Predicated region
    $region34: #{tpu_custom_call.1} parent=1 // pred_check
      _
    $region35: #{tpu_custom_call.1} parent=1 // pred_check_branch
      %54 = sbr.rel (0) target = $region37
    $region36: #{tpu_custom_call.1} parent=1 // pred_region
      _
    $region37: #{tpu_custom_call.1} parent=1 // pred_fallthru
      _
    // Predicated region
    $region38: #{tpu_custom_call.1} parent=1 // pred_check
      _
    $region39: #{tpu_custom_call.1} parent=1 // pred_check_branch
      %56 = sbr.rel (0) target = $region41
    $region40: #{tpu_custom_call.1} parent=1 // pred_region
      %57 = dma.done [#allocation5], 512
    $region41: #{tpu_custom_call.1} parent=1 // pred_fallthru
      _
    // Predicated region
    $region42: #{tpu_custom_call.1} parent=1 // pred_check
      _
    $region43: #{tpu_custom_call.1} parent=1 // pred_check_branch
      %59 = sbr.rel (0) target = $region45
    $region44: #{tpu_custom_call.1} parent=1 // pred_region
      %60 = dma.done [#allocation8], 512
    $region45: #{tpu_custom_call.1} parent=1 // pred_fallthru
      _
    %v61 = vld [vmem:[%s1] sm:$0xf]
    %v62 = vld [vmem:[%s2] sm:$0xff]
    %v63 = vld [vmem:[%s2 + $0x8] sm:$0xff]
    %v64 = vld [vmem:[%s2 + $0x10] sm:$0xff]
    %v65 = vld [vmem:[%s2 + $0x18] sm:$0xff]
    %v66 = vld [vmem:[%s3] sm:$0x1]
    %v67 = vld [vmem:[%s0] sm:$0xff]
    %v68 = vld [vmem:[%s0 + $0x8] sm:$0xff]
    %v69 = vld [vmem:[%s0 + $0x10] sm:$0xff]
    %v70 = vld [vmem:[%s0 + $0x18] sm:$0xff]
    %v71 = vld [vmem:[%s0 + $0x20] sm:$0xff]
    %v72 = vld [vmem:[%s0 + $0x28] sm:$0xff]
    %v73 = vld [vmem:[%s0 + $0x30] sm:$0xff]
    %v74 = vld [vmem:[%s0 + $0x38] sm:$0xff]
    %v76 = vlaneseq
    %v77 = vshrl.u32 %v76, 7
    %v78 = vsub.s32 0, %v77
    %v79 = vrot.slane %v66, %v78
    %vm81 = vcmask 31744
    %v83 = vsel %vm81, %v67, 0
    %v86 = vsel %vm81, %v68, 0
    %v89 = vsel %vm81, %v69, 0
    %v92 = vsel %vm81, %v70, 0
    %v95 = vsel %vm81, %v71, 0
    %v98 = vsel %vm81, %v72, 0
    %v101 = vsel %vm81, %v73, 0
    %v104 = vsel %vm81, %v74, 0
    %vm106 = vcmask 1043456
    %v108 = vsel %vm106, %v61, 0
    %110 = vmatprep.subr.mxu0 0.0
    %111 = vmatpush1.msra.mxu0 %v108
    %112 = vmatprep.subr.mxu0 0.0
    %113 = vmatpush1.msra.mxu0 0.0
    %114 = vmatprep.subr.mxu0 0.0
    %115 = vmatpush1.msra.mxu0 0.0
    %116 = vmatprep.subr.mxu0 0.0
    %117 = vmatpush1.msra.mxu0 0.0
    %118 = vmatprep.subr.mxu0 0.0
    %119 = vmatpush1.msra.mxu0 0.0
    %120 = vmatprep.subr.mxu0 0.0
    %121 = vmatpush1.msra.mxu0 0.0
    %122 = vmatprep.subr.mxu0 0.0
    %123 = vmatpush1.msra.mxu0 0.0
    %124 = vmatprep.subr.mxu0 0.0
    %125 = vmatpush1.msra.mxu0 0.0
    %126 = vmatprep.subr.mxu0 0.0
    %127 = vmatpush1.msra.mxu0 0.0
    %128 = vmatprep.subr.mxu0 0.0
    %129 = vmatpush1.msra.mxu0 0.0
    %130 = vmatprep.subr.mxu0 0.0
    %131 = vmatpush1.msra.mxu0 0.0
    %132 = vmatprep.subr.mxu0 0.0
    %133 = vmatpush1.msra.mxu0 0.0
    %134 = vmatprep.subr.mxu0 0.0
    %135 = vmatpush1.msra.mxu0 0.0
    %136 = vmatprep.subr.mxu0 0.0
    %137 = vmatpush1.msra.mxu0 0.0
    %138 = vmatprep.subr.mxu0 0.0
    %139 = vmatpush1.msra.mxu0 0.0
    %140 = vmatprep.subr.mxu0 0.0
    %141 = vmatpush1.msra.mxu0 0.0
    %142 = vmatprep.subr.mxu0 0.0
    %143 = vmatpush1.msra.mxu0 0.0
    %144 = vmatprep.subr.mxu0 0.0
    %145 = vmatpush1.msra.mxu0 0.0
    %146 = vmatprep.subr.mxu0 0.0
    %147 = vmatpush1.msra.mxu0 0.0
    %148 = vmatprep.subr.mxu0 0.0
    %149 = vmatpush1.msra.mxu0 0.0
    %150 = vmatprep.subr.mxu0 0.0
    %151 = vmatpush1.msra.mxu0 0.0
    %152 = vmatprep.subr.mxu0 0.0
    %153 = vmatpush1.msra.mxu0 0.0
    %154 = vmatprep.subr.mxu0 0.0
    %155 = vmatpush1.msra.mxu0 0.0
    %156 = vmatprep.subr.mxu0 0.0
    %157 = vmatpush1.msra.mxu0 0.0
    %158 = vmatprep.subr.mxu0 0.0
    %159 = vmatpush1.msra.mxu0 0.0
    %160 = vmatprep.subr.mxu0 0.0
    %161 = vmatpush1.msra.mxu0 0.0
    %162 = vmatprep.subr.mxu0 0.0
    %163 = vmatpush1.msra.mxu0 0.0
    %164 = vmatprep.subr.mxu0 0.0
    %165 = vmatpush1.msra.mxu0 0.0
    %166 = vmatprep.subr.mxu0 0.0
    %167 = vmatpush1.msra.mxu0 0.0
    %168 = vmatprep.subr.mxu0 0.0
    %169 = vmatpush1.msra.mxu0 0.0
    %170 = vmatprep.subr.mxu0 0.0
    %171 = vmatpush1.msra.mxu0 0.0
    %172 = vmatprep.subr.mxu0 0.0
    %173 = vmatpush1.msra.mxu0 0.0
    %174 = vmatprep.mubr.f32.mxu0 0.0
    %175 = vmatmul.mubr.f32.gmra.mrb[0].mxu0 %v83
    %v176 = vpop.f32.mrb[0].mxu0
    %v177 = vadd.f32 %v79, %v176
    %v178 = vpop.f32.mrb[0].mxu0
    %179 = vmatprep.mubr.f32.mxu0 0.0
    %180 = vmatmul.mubr.f32.gmra.mrb[0].mxu0 %v86
    %v181 = vpop.f32.mrb[0].mxu0
    %v182 = vadd.f32 %v79, %v181
    %v183 = vpop.f32.mrb[0].mxu0
    %184 = vmatprep.mubr.f32.mxu0 0.0
    %185 = vmatmul.mubr.f32.gmra.mrb[0].mxu0 %v89
    %v186 = vpop.f32.mrb[0].mxu0
    %v187 = vadd.f32 %v79, %v186
    %v188 = vpop.f32.mrb[0].mxu0
    %189 = vmatprep.mubr.f32.mxu0 0.0
    %190 = vmatmul.mubr.f32.gmra.mrb[0].mxu0 %v92
    %v191 = vpop.f32.mrb[0].mxu0
    %v192 = vadd.f32 %v79, %v191
    %v193 = vpop.f32.mrb[0].mxu0
    %194 = vmatprep.mubr.f32.mxu0 0.0
    %195 = vmatmul.mubr.f32.gmra.mrb[0].mxu0 %v95
    %v196 = vpop.f32.mrb[0].mxu0
    %v197 = vadd.f32 %v79, %v196
    %v198 = vpop.f32.mrb[0].mxu0
    %199 = vmatprep.mubr.f32.mxu0 0.0
    %200 = vmatmul.mubr.f32.gmra.mrb[0].mxu0 %v98
    %v201 = vpop.f32.mrb[0].mxu0
    %v202 = vadd.f32 %v79, %v201
    %v203 = vpop.f32.mrb[0].mxu0
    %204 = vmatprep.mubr.f32.mxu0 0.0
    %205 = vmatmul.mubr.f32.gmra.mrb[0].mxu0 %v101
    %v206 = vpop.f32.mrb[0].mxu0
    %v207 = vadd.f32 %v79, %v206
    %v208 = vpop.f32.mrb[0].mxu0
    %209 = vmatprep.mubr.f32.mxu0 0.0
    %210 = vmatmul.mubr.f32.gmra.mrb[0].mxu0 %v104
    %v211 = vpop.f32.mrb[0].mxu0
    %v212 = vadd.f32 %v79, %v211
    %v213 = vpop.f32.mrb[0].mxu0
    %214 = vdwg.mxu0
    %215 = vst [vmem:[#allocation2] sm:$0xff] %v177
    %216 = vst [vmem:[#allocation2 + $0x8] sm:$0xff] %v182
    %217 = vst [vmem:[#allocation2 + $0x10] sm:$0xff] %v187
    %218 = vst [vmem:[#allocation2 + $0x18] sm:$0xff] %v192
    %219 = vst [vmem:[#allocation2 + $0x20] sm:$0xff] %v197
    %220 = vst [vmem:[#allocation2 + $0x28] sm:$0xff] %v202
    %221 = vst [vmem:[#allocation2 + $0x30] sm:$0xff] %v207
    %222 = vst [vmem:[#allocation2 + $0x38] sm:$0xff] %v212
    %v223 = vld [vmem:[#allocation2] sm:$0xff]
    %vm224 = vcmask 261120
    %v226 = vsel %vm224, 0.0, 0
    %228 = vmatprep.subr.mxu0 0.0
    %229 = vmatpush1.msra.mxu0 %v62
    %230 = vmatprep.subr.mxu0 0.0
    %231 = vmatpush1.msra.mxu0 %v63
    %232 = vmatprep.subr.mxu0 0.0
    %233 = vmatpush1.msra.mxu0 %v64
    %234 = vmatprep.subr.mxu0 0.0
    %235 = vmatpush1.msra.mxu0 %v65
    %236 = vmatprep.subr.mxu0 0.0
    %237 = vmatpush1.msra.mxu0 0.0
    %238 = vmatprep.subr.mxu0 0.0
    %239 = vmatpush1.msra.mxu0 0.0
    %240 = vmatprep.subr.mxu0 0.0
    %241 = vmatpush1.msra.mxu0 0.0
    %242 = vmatprep.subr.mxu0 0.0
    %243 = vmatpush1.msra.mxu0 0.0
    %244 = vmatprep.subr.mxu0 0.0
    %245 = vmatpush1.msra.mxu0 0.0
    %246 = vmatprep.subr.mxu0 0.0
    %247 = vmatpush1.msra.mxu0 0.0
    %248 = vmatprep.subr.mxu0 0.0
    %249 = vmatpush1.msra.mxu0 0.0
    %250 = vmatprep.subr.mxu0 0.0
    %251 = vmatpush1.msra.mxu0 0.0
    %252 = vmatprep.subr.mxu0 0.0
    %253 = vmatpush1.msra.mxu0 0.0
    %254 = vmatprep.subr.mxu0 0.0
    %255 = vmatpush1.msra.mxu0 0.0
    %256 = vmatprep.subr.mxu0 0.0
    %257 = vmatpush1.msra.mxu0 0.0
    %258 = vmatprep.subr.mxu0 0.0
    %259 = vmatpush1.msra.mxu0 0.0
    %260 = vmatprep.subr.mxu0 0.0
    %261 = vmatpush1.msra.mxu0 0.0
    %262 = vmatprep.subr.mxu0 0.0
    %263 = vmatpush1.msra.mxu0 0.0
    %264 = vmatprep.subr.mxu0 0.0
    %265 = vmatpush1.msra.mxu0 0.0
    %266 = vmatprep.subr.mxu0 0.0
    %267 = vmatpush1.msra.mxu0 0.0
    %268 = vmatprep.subr.mxu0 0.0
    %269 = vmatpush1.msra.mxu0 0.0
    %270 = vmatprep.subr.mxu0 0.0
    %271 = vmatpush1.msra.mxu0 0.0
    %272 = vmatprep.subr.mxu0 0.0
    %273 = vmatpush1.msra.mxu0 0.0
    %274 = vmatprep.subr.mxu0 0.0
    %275 = vmatpush1.msra.mxu0 0.0
    %276 = vmatprep.subr.mxu0 0.0
    %277 = vmatpush1.msra.mxu0 0.0
    %278 = vmatprep.subr.mxu0 0.0
    %279 = vmatpush1.msra.mxu0 0.0
    %280 = vmatprep.subr.mxu0 0.0
    %281 = vmatpush1.msra.mxu0 0.0
    %282 = vmatprep.subr.mxu0 0.0
    %283 = vmatpush1.msra.mxu0 0.0
    %284 = vmatprep.subr.mxu0 0.0
    %285 = vmatpush1.msra.mxu0 0.0
    %286 = vmatprep.subr.mxu0 0.0
    %287 = vmatpush1.msra.mxu0 0.0
    %288 = vmatprep.subr.mxu0 0.0
    %289 = vmatpush1.msra.mxu0 0.0
    %290 = vmatprep.subr.mxu0 0.0
    %291 = vmatpush1.msra.mxu0 0.0
    %292 = vmatprep.mubr.f32.mxu0 0.0
    %293 = vmatmul.mubr.f32.gmra.mrb[0].mxu0 %v226
    %v294 = vpop.f32.mrb[0].mxu0
    %v295 = vadd.f32 0.0, %v294
    %v296 = vpop.f32.mrb[0].mxu0
    %297 = vdwg.mxu0
    %v298 = vadd.f32 %v223, %v295
    %v299 = vxor.u32 %v298, 2147483648
    %v300 = vmul.f32 %v299, 1.442695
    %v301 = vpow.pop %v300
    %v302 = vadd.f32 %v301, 1.0
    %v303 = vrcp.pop %v302
    %v304 = vmul.f32 1.0, %v303
    %v305 = vtanh.pop %v298
    %v306 = vmul.f32 %v304, 0.0
    %308 = vrot.lane.b32.xlu0 %v305, 32
    %v309 = vpop.permute.xlu0 %308
    %v311 = vmul.f32 %v304, %v309
    %313 = vrot.lane.b32.xlu0 %v311, 32
    %v314 = vpop.permute.xlu0 %313
    %v316 = vadd.f32 %v306, %v314
    %v317 = vtanh.pop %v316
    %319 = vrot.lane.b32.xlu0 %v317, 32
    %v320 = vpop.permute.xlu0 %319
    %v322 = vmul.f32 %v304, %v320
    %324 = vrot.lane.b32.xlu0 %v322, 64
    %v325 = vpop.permute.xlu0 %324
    %327 = vst.msk [vmem:[#allocation3] sm:$0xff] %vm224, %v325
    %s328 = scalar_lea.vmem [#allocation2], 8
    %v329 = vld [vmem:[%s328] sm:$0xff]
    %v330 = vsel %vm224, %v325, 0
    %332 = vmatprep.subr.mxu0 0.0
    %333 = vmatpush1.msra.mxu0 %v62
    %334 = vmatprep.subr.mxu0 0.0
    %335 = vmatpush1.msra.mxu0 %v63
    %336 = vmatprep.subr.mxu0 0.0
    %337 = vmatpush1.msra.mxu0 %v64
    %338 = vmatprep.subr.mxu0 0.0
    %339 = vmatpush1.msra.mxu0 %v65
    %340 = vmatprep.subr.mxu0 0.0
    %341 = vmatpush1.msra.mxu0 0.0
    %342 = vmatprep.subr.mxu0 0.0
    %343 = vmatpush1.msra.mxu0 0.0
    %344 = vmatprep.subr.mxu0 0.0
    %345 = vmatpush1.msra.mxu0 0.0
    %346 = vmatprep.subr.mxu0 0.0
    %347 = vmatpush1.msra.mxu0 0.0
    %348 = vmatprep.subr.mxu0 0.0
    %349 = vmatpush1.msra.mxu0 0.0
    %350 = vmatprep.subr.mxu0 0.0
    %351 = vmatpush1.msra.mxu0 0.0
    %352 = vmatprep.subr.mxu0 0.0
    %353 = vmatpush1.msra.mxu0 0.0
    %354 = vmatprep.subr.mxu0 0.0
    %355 = vmatpush1.msra.mxu0 0.0
    %356 = vmatprep.subr.mxu0 0.0
    %357 = vmatpush1.msra.mxu0 0.0
    %358 = vmatprep.subr.mxu0 0.0
    %359 = vmatpush1.msra.mxu0 0.0
    %360 = vmatprep.subr.mxu0 0.0
    %361 = vmatpush1.msra.mxu0 0.0
    %362 = vmatprep.subr.mxu0 0.0
    %363 = vmatpush1.msra.mxu0 0.0
    %364 = vmatprep.subr.mxu0 0.0
    %365 = vmatpush1.msra.mxu0 0.0
    %366 = vmatprep.subr.mxu0 0.0
    %367 = vmatpush1.msra.mxu0 0.0
    %368 = vmatprep.subr.mxu0 0.0
    %369 = vmatpush1.msra.mxu0 0.0
    %370 = vmatprep.subr.mxu0 0.0
    %371 = vmatpush1.msra.mxu0 0.0
    %372 = vmatprep.subr.mxu0 0.0
    %373 = vmatpush1.msra.mxu0 0.0
    %374 = vmatprep.subr.mxu0 0.0
    %375 = vmatpush1.msra.mxu0 0.0
    %376 = vmatprep.subr.mxu0 0.0
    %377 = vmatpush1.msra.mxu0 0.0
    %378 = vmatprep.subr.mxu0 0.0
    %379 = vmatpush1.msra.mxu0 0.0
    %380 = vmatprep.subr.mxu0 0.0
    %381 = vmatpush1.msra.mxu0 0.0
    %382 = vmatprep.subr.mxu0 0.0
    %383 = vmatpush1.msra.mxu0 0.0
    %384 = vmatprep.subr.mxu0 0.0
    %385 = vmatpush1.msra.mxu0 0.0
    %386 = vmatprep.subr.mxu0 0.0
    %387 = vmatpush1.msra.mxu0 0.0
    %388 = vmatprep.subr.mxu0 0.0
    %389 = vmatpush1.msra.mxu0 0.0
    %390 = vmatprep.subr.mxu0 0.0
    %391 = vmatpush1.msra.mxu0 0.0
    %392 = vmatprep.subr.mxu0 0.0
    %393 = vmatpush1.msra.mxu0 0.0
    %394 = vmatprep.subr.mxu0 0.0
    %395 = vmatpush1.msra.mxu0 0.0
    %396 = vmatprep.mubr.f32.mxu0 0.0
    %397 = vmatmul.mubr.f32.gmra.mrb[0].mxu0 %v330
    %v398 = vpop.f32.mrb[0].mxu0
    %v399 = vadd.f32 0.0, %v398
    %v400 = vpop.f32.mrb[0].mxu0
    %401 = vdwg.mxu0
    %v402 = vadd.f32 %v329, %v399
    %v403 = vxor.u32 %v402, 2147483648
    %v404 = vmul.f32 %v403, 1.442695
    %v405 = vpow.pop %v404
    %v406 = vadd.f32 %v405, 1.0
    %v407 = vrcp.pop %v406
    %v408 = vmul.f32 1.0, %v407
    %v409 = vtanh.pop %v402
    %v410 = vmul.f32 %v408, %v316
    %412 = vrot.lane.b32.xlu0 %v409, 32
    %v413 = vpop.permute.xlu0 %412
    %v415 = vmul.f32 %v408, %v413
    %417 = vrot.lane.b32.xlu0 %v415, 32
    %v418 = vpop.permute.xlu0 %417
    %v420 = vadd.f32 %v410, %v418
    %v421 = vtanh.pop %v420
    %423 = vrot.lane.b32.xlu0 %v421, 32
    %v424 = vpop.permute.xlu0 %423
    %v426 = vmul.f32 %v408, %v424
    %428 = vrot.lane.b32.xlu0 %v426, 64
    %v429 = vpop.permute.xlu0 %428
    %s431 = scalar_lea.vmem [#allocation3], 8
    %432 = vst.msk [vmem:[%s431] sm:$0xff] %vm224, %v429
    %s433 = scalar_lea.vmem [#allocation2], 16
    %v434 = vld [vmem:[%s433] sm:$0xff]
    %v435 = vsel %vm224, %v429, 0
    %437 = vmatprep.subr.mxu0 0.0
    %438 = vmatpush1.msra.mxu0 %v62
    %439 = vmatprep.subr.mxu0 0.0
    %440 = vmatpush1.msra.mxu0 %v63
    %441 = vmatprep.subr.mxu0 0.0
    %442 = vmatpush1.msra.mxu0 %v64
    %443 = vmatprep.subr.mxu0 0.0
    %444 = vmatpush1.msra.mxu0 %v65
    %445 = vmatprep.subr.mxu0 0.0
    %446 = vmatpush1.msra.mxu0 0.0
    %447 = vmatprep.subr.mxu0 0.0
    %448 = vmatpush1.msra.mxu0 0.0
    %449 = vmatprep.subr.mxu0 0.0
    %450 = vmatpush1.msra.mxu0 0.0
    %451 = vmatprep.subr.mxu0 0.0
    %452 = vmatpush1.msra.mxu0 0.0
    %453 = vmatprep.subr.mxu0 0.0
    %454 = vmatpush1.msra.mxu0 0.0
    %455 = vmatprep.subr.mxu0 0.0
    %456 = vmatpush1.msra.mxu0 0.0
    %457 = vmatprep.subr.mxu0 0.0
    %458 = vmatpush1.msra.mxu0 0.0
    %459 = vmatprep.subr.mxu0 0.0
    %460 = vmatpush1.msra.mxu0 0.0
    %461 = vmatprep.subr.mxu0 0.0
    %462 = vmatpush1.msra.mxu0 0.0
    %463 = vmatprep.subr.mxu0 0.0
    %464 = vmatpush1.msra.mxu0 0.0
    %465 = vmatprep.subr.mxu0 0.0
    %466 = vmatpush1.msra.mxu0 0.0
    %467 = vmatprep.subr.mxu0 0.0
    %468 = vmatpush1.msra.mxu0 0.0
    %469 = vmatprep.subr.mxu0 0.0
    %470 = vmatpush1.msra.mxu0 0.0
    %471 = vmatprep.subr.mxu0 0.0
    %472 = vmatpush1.msra.mxu0 0.0
    %473 = vmatprep.subr.mxu0 0.0
    %474 = vmatpush1.msra.mxu0 0.0
    %475 = vmatprep.subr.mxu0 0.0
    %476 = vmatpush1.msra.mxu0 0.0
    %477 = vmatprep.subr.mxu0 0.0
    %478 = vmatpush1.msra.mxu0 0.0
    %479 = vmatprep.subr.mxu0 0.0
    %480 = vmatpush1.msra.mxu0 0.0
    %481 = vmatprep.subr.mxu0 0.0
    %482 = vmatpush1.msra.mxu0 0.0
    %483 = vmatprep.subr.mxu0 0.0
    %484 = vmatpush1.msra.mxu0 0.0
    %485 = vmatprep.subr.mxu0 0.0
    %486 = vmatpush1.msra.mxu0 0.0
    %487 = vmatprep.subr.mxu0 0.0
    %488 = vmatpush1.msra.mxu0 0.0
    %489 = vmatprep.subr.mxu0 0.0
    %490 = vmatpush1.msra.mxu0 0.0
    %491 = vmatprep.subr.mxu0 0.0
    %492 = vmatpush1.msra.mxu0 0.0
    %493 = vmatprep.subr.mxu0 0.0
    %494 = vmatpush1.msra.mxu0 0.0
    %495 = vmatprep.subr.mxu0 0.0
    %496 = vmatpush1.msra.mxu0 0.0
    %497 = vmatprep.subr.mxu0 0.0
    %498 = vmatpush1.msra.mxu0 0.0
    %499 = vmatprep.subr.mxu0 0.0
    %500 = vmatpush1.msra.mxu0 0.0
    %501 = vmatprep.mubr.f32.mxu0 0.0
    %502 = vmatmul.mubr.f32.gmra.mrb[0].mxu0 %v435
    %v503 = vpop.f32.mrb[0].mxu0
    %v504 = vadd.f32 0.0, %v503
    %v505 = vpop.f32.mrb[0].mxu0
    %506 = vdwg.mxu0
    %v507 = vadd.f32 %v434, %v504
    %v508 = vxor.u32 %v507, 2147483648
    %v509 = vmul.f32 %v508, 1.442695
    %v510 = vpow.pop %v509
    %v511 = vadd.f32 %v510, 1.0
    %v512 = vrcp.pop %v511
    %v513 = vmul.f32 1.0, %v512
    %v514 = vtanh.pop %v507
    %v515 = vmul.f32 %v513, %v420
    %517 = vrot.lane.b32.xlu0 %v514, 32
    %v518 = vpop.permute.xlu0 %517
    %v520 = vmul.f32 %v513, %v518
    %522 = vrot.lane.b32.xlu0 %v520, 32
    %v523 = vpop.permute.xlu0 %522
    %v525 = vadd.f32 %v515, %v523
    %v526 = vtanh.pop %v525
    %528 = vrot.lane.b32.xlu0 %v526, 32
    %v529 = vpop.permute.xlu0 %528
    %v531 = vmul.f32 %v513, %v529
    %533 = vrot.lane.b32.xlu0 %v531, 64
    %v534 = vpop.permute.xlu0 %533
    %s536 = scalar_lea.vmem [#allocation3], 16
    %537 = vst.msk [vmem:[%s536] sm:$0xff] %vm224, %v534
    %s538 = scalar_lea.vmem [#allocation2], 24
    %v539 = vld [vmem:[%s538] sm:$0xff]
    %v540 = vsel %vm224, %v534, 0
    %542 = vmatprep.subr.mxu0 0.0
    %543 = vmatpush1.msra.mxu0 %v62
    %544 = vmatprep.subr.mxu0 0.0
    %545 = vmatpush1.msra.mxu0 %v63
    %546 = vmatprep.subr.mxu0 0.0
    %547 = vmatpush1.msra.mxu0 %v64
    %548 = vmatprep.subr.mxu0 0.0
    %549 = vmatpush1.msra.mxu0 %v65
    %550 = vmatprep.subr.mxu0 0.0
    %551 = vmatpush1.msra.mxu0 0.0
    %552 = vmatprep.subr.mxu0 0.0
    %553 = vmatpush1.msra.mxu0 0.0
    %554 = vmatprep.subr.mxu0 0.0
    %555 = vmatpush1.msra.mxu0 0.0
    %556 = vmatprep.subr.mxu0 0.0
    %557 = vmatpush1.msra.mxu0 0.0
    %558 = vmatprep.subr.mxu0 0.0
    %559 = vmatpush1.msra.mxu0 0.0
    %560 = vmatprep.subr.mxu0 0.0
    %561 = vmatpush1.msra.mxu0 0.0
    %562 = vmatprep.subr.mxu0 0.0
    %563 = vmatpush1.msra.mxu0 0.0
    %564 = vmatprep.subr.mxu0 0.0
    %565 = vmatpush1.msra.mxu0 0.0
    %566 = vmatprep.subr.mxu0 0.0
    %567 = vmatpush1.msra.mxu0 0.0
    %568 = vmatprep.subr.mxu0 0.0
    %569 = vmatpush1.msra.mxu0 0.0
    %570 = vmatprep.subr.mxu0 0.0
    %571 = vmatpush1.msra.mxu0 0.0
    %572 = vmatprep.subr.mxu0 0.0
    %573 = vmatpush1.msra.mxu0 0.0
    %574 = vmatprep.subr.mxu0 0.0
    %575 = vmatpush1.msra.mxu0 0.0
    %576 = vmatprep.subr.mxu0 0.0
    %577 = vmatpush1.msra.mxu0 0.0
    %578 = vmatprep.subr.mxu0 0.0
    %579 = vmatpush1.msra.mxu0 0.0
    %580 = vmatprep.subr.mxu0 0.0
    %581 = vmatpush1.msra.mxu0 0.0
    %582 = vmatprep.subr.mxu0 0.0
    %583 = vmatpush1.msra.mxu0 0.0
    %584 = vmatprep.subr.mxu0 0.0
    %585 = vmatpush1.msra.mxu0 0.0
    %586 = vmatprep.subr.mxu0 0.0
    %587 = vmatpush1.msra.mxu0 0.0
    %588 = vmatprep.subr.mxu0 0.0
    %589 = vmatpush1.msra.mxu0 0.0
    %590 = vmatprep.subr.mxu0 0.0
    %591 = vmatpush1.msra.mxu0 0.0
    %592 = vmatprep.subr.mxu0 0.0
    %593 = vmatpush1.msra.mxu0 0.0
    %594 = vmatprep.subr.mxu0 0.0
    %595 = vmatpush1.msra.mxu0 0.0
    %596 = vmatprep.subr.mxu0 0.0
    %597 = vmatpush1.msra.mxu0 0.0
    %598 = vmatprep.subr.mxu0 0.0
    %599 = vmatpush1.msra.mxu0 0.0
    %600 = vmatprep.subr.mxu0 0.0
    %601 = vmatpush1.msra.mxu0 0.0
    %602 = vmatprep.subr.mxu0 0.0
    %603 = vmatpush1.msra.mxu0 0.0
    %604 = vmatprep.subr.mxu0 0.0
    %605 = vmatpush1.msra.mxu0 0.0
    %606 = vmatprep.mubr.f32.mxu0 0.0
    %607 = vmatmul.mubr.f32.gmra.mrb[0].mxu0 %v540
    %v608 = vpop.f32.mrb[0].mxu0
    %v609 = vadd.f32 0.0, %v608
    %v610 = vpop.f32.mrb[0].mxu0
    %611 = vdwg.mxu0
    %v612 = vadd.f32 %v539, %v609
    %v613 = vxor.u32 %v612, 2147483648
    %v614 = vmul.f32 %v613, 1.442695
    %v615 = vpow.pop %v614
    %v616 = vadd.f32 %v615, 1.0
    %v617 = vrcp.pop %v616
    %v618 = vmul.f32 1.0, %v617
    %v619 = vtanh.pop %v612
    %v620 = vmul.f32 %v618, %v525
    %622 = vrot.lane.b32.xlu0 %v619, 32
    %v623 = vpop.permute.xlu0 %622
    %v625 = vmul.f32 %v618, %v623
    %627 = vrot.lane.b32.xlu0 %v625, 32
    %v628 = vpop.permute.xlu0 %627
    %v630 = vadd.f32 %v620, %v628
    %v631 = vtanh.pop %v630
    %633 = vrot.lane.b32.xlu0 %v631, 32
    %v634 = vpop.permute.xlu0 %633
    %v636 = vmul.f32 %v618, %v634
    %638 = vrot.lane.b32.xlu0 %v636, 64
    %v639 = vpop.permute.xlu0 %638
    %s641 = scalar_lea.vmem [#allocation3], 24
    %642 = vst.msk [vmem:[%s641] sm:$0xff] %vm224, %v639
    %s643 = scalar_lea.vmem [#allocation2], 32
    %v644 = vld [vmem:[%s643] sm:$0xff]
    %v645 = vsel %vm224, %v639, 0
    %647 = vmatprep.subr.mxu0 0.0
    %648 = vmatpush1.msra.mxu0 %v62
    %649 = vmatprep.subr.mxu0 0.0
    %650 = vmatpush1.msra.mxu0 %v63
    %651 = vmatprep.subr.mxu0 0.0
    %652 = vmatpush1.msra.mxu0 %v64
    %653 = vmatprep.subr.mxu0 0.0
    %654 = vmatpush1.msra.mxu0 %v65
    %655 = vmatprep.subr.mxu0 0.0
    %656 = vmatpush1.msra.mxu0 0.0
    %657 = vmatprep.subr.mxu0 0.0
    %658 = vmatpush1.msra.mxu0 0.0
    %659 = vmatprep.subr.mxu0 0.0
    %660 = vmatpush1.msra.mxu0 0.0
    %661 = vmatprep.subr.mxu0 0.0
    %662 = vmatpush1.msra.mxu0 0.0
    %663 = vmatprep.subr.mxu0 0.0
    %664 = vmatpush1.msra.mxu0 0.0
    %665 = vmatprep.subr.mxu0 0.0
    %666 = vmatpush1.msra.mxu0 0.0
    %667 = vmatprep.subr.mxu0 0.0
    %668 = vmatpush1.msra.mxu0 0.0
    %669 = vmatprep.subr.mxu0 0.0
    %670 = vmatpush1.msra.mxu0 0.0
    %671 = vmatprep.subr.mxu0 0.0
    %672 = vmatpush1.msra.mxu0 0.0
    %673 = vmatprep.subr.mxu0 0.0
    %674 = vmatpush1.msra.mxu0 0.0
    %675 = vmatprep.subr.mxu0 0.0
    %676 = vmatpush1.msra.mxu0 0.0
    %677 = vmatprep.subr.mxu0 0.0
    %678 = vmatpush1.msra.mxu0 0.0
    %679 = vmatprep.subr.mxu0 0.0
    %680 = vmatpush1.msra.mxu0 0.0
    %681 = vmatprep.subr.mxu0 0.0
    %682 = vmatpush1.msra.mxu0 0.0
    %683 = vmatprep.subr.mxu0 0.0
    %684 = vmatpush1.msra.mxu0 0.0
    %685 = vmatprep.subr.mxu0 0.0
    %686 = vmatpush1.msra.mxu0 0.0
    %687 = vmatprep.subr.mxu0 0.0
    %688 = vmatpush1.msra.mxu0 0.0
    %689 = vmatprep.subr.mxu0 0.0
    %690 = vmatpush1.msra.mxu0 0.0
    %691 = vmatprep.subr.mxu0 0.0
    %692 = vmatpush1.msra.mxu0 0.0
    %693 = vmatprep.subr.mxu0 0.0
    %694 = vmatpush1.msra.mxu0 0.0
    %695 = vmatprep.subr.mxu0 0.0
    %696 = vmatpush1.msra.mxu0 0.0
    %697 = vmatprep.subr.mxu0 0.0
    %698 = vmatpush1.msra.mxu0 0.0
    %699 = vmatprep.subr.mxu0 0.0
    %700 = vmatpush1.msra.mxu0 0.0
    %701 = vmatprep.subr.mxu0 0.0
    %702 = vmatpush1.msra.mxu0 0.0
    %703 = vmatprep.subr.mxu0 0.0
    %704 = vmatpush1.msra.mxu0 0.0
    %705 = vmatprep.subr.mxu0 0.0
    %706 = vmatpush1.msra.mxu0 0.0
    %707 = vmatprep.subr.mxu0 0.0
    %708 = vmatpush1.msra.mxu0 0.0
    %709 = vmatprep.subr.mxu0 0.0
    %710 = vmatpush1.msra.mxu0 0.0
    %711 = vmatprep.mubr.f32.mxu0 0.0
    %712 = vmatmul.mubr.f32.gmra.mrb[0].mxu0 %v645
    %v713 = vpop.f32.mrb[0].mxu0
    %v714 = vadd.f32 0.0, %v713
    %v715 = vpop.f32.mrb[0].mxu0
    %716 = vdwg.mxu0
    %v717 = vadd.f32 %v644, %v714
    %v718 = vxor.u32 %v717, 2147483648
    %v719 = vmul.f32 %v718, 1.442695
    %v720 = vpow.pop %v719
    %v721 = vadd.f32 %v720, 1.0
    %v722 = vrcp.pop %v721
    %v723 = vmul.f32 1.0, %v722
    %v724 = vtanh.pop %v717
    %v725 = vmul.f32 %v723, %v630
    %727 = vrot.lane.b32.xlu0 %v724, 32
    %v728 = vpop.permute.xlu0 %727
    %v730 = vmul.f32 %v723, %v728
    %732 = vrot.lane.b32.xlu0 %v730, 32
    %v733 = vpop.permute.xlu0 %732
    %v735 = vadd.f32 %v725, %v733
    %v736 = vtanh.pop %v735
    %738 = vrot.lane.b32.xlu0 %v736, 32
    %v739 = vpop.permute.xlu0 %738
    %v741 = vmul.f32 %v723, %v739
    %743 = vrot.lane.b32.xlu0 %v741, 64
    %v744 = vpop.permute.xlu0 %743
    %s746 = scalar_lea.vmem [#allocation3], 32
    %747 = vst.msk [vmem:[%s746] sm:$0xff] %vm224, %v744
    %s748 = scalar_lea.vmem [#allocation2], 40
    %v749 = vld [vmem:[%s748] sm:$0xff]
    %v750 = vsel %vm224, %v744, 0
    %752 = vmatprep.subr.mxu0 0.0
    %753 = vmatpush1.msra.mxu0 %v62
    %754 = vmatprep.subr.mxu0 0.0
    %755 = vmatpush1.msra.mxu0 %v63
    %756 = vmatprep.subr.mxu0 0.0
    %757 = vmatpush1.msra.mxu0 %v64
    %758 = vmatprep.subr.mxu0 0.0
    %759 = vmatpush1.msra.mxu0 %v65
    %760 = vmatprep.subr.mxu0 0.0
    %761 = vmatpush1.msra.mxu0 0.0
    %762 = vmatprep.subr.mxu0 0.0
    %763 = vmatpush1.msra.mxu0 0.0
    %764 = vmatprep.subr.mxu0 0.0
    %765 = vmatpush1.msra.mxu0 0.0
    %766 = vmatprep.subr.mxu0 0.0
    %767 = vmatpush1.msra.mxu0 0.0
    %768 = vmatprep.subr.mxu0 0.0
    %769 = vmatpush1.msra.mxu0 0.0
    %770 = vmatprep.subr.mxu0 0.0
    %771 = vmatpush1.msra.mxu0 0.0
    %772 = vmatprep.subr.mxu0 0.0
    %773 = vmatpush1.msra.mxu0 0.0
    %774 = vmatprep.subr.mxu0 0.0
    %775 = vmatpush1.msra.mxu0 0.0
    %776 = vmatprep.subr.mxu0 0.0
    %777 = vmatpush1.msra.mxu0 0.0
    %778 = vmatprep.subr.mxu0 0.0
    %779 = vmatpush1.msra.mxu0 0.0
    %780 = vmatprep.subr.mxu0 0.0
    %781 = vmatpush1.msra.mxu0 0.0
    %782 = vmatprep.subr.mxu0 0.0
    %783 = vmatpush1.msra.mxu0 0.0
    %784 = vmatprep.subr.mxu0 0.0
    %785 = vmatpush1.msra.mxu0 0.0
    %786 = vmatprep.subr.mxu0 0.0
    %787 = vmatpush1.msra.mxu0 0.0
    %788 = vmatprep.subr.mxu0 0.0
    %789 = vmatpush1.msra.mxu0 0.0
    %790 = vmatprep.subr.mxu0 0.0
    %791 = vmatpush1.msra.mxu0 0.0
    %792 = vmatprep.subr.mxu0 0.0
    %793 = vmatpush1.msra.mxu0 0.0
    %794 = vmatprep.subr.mxu0 0.0
    %795 = vmatpush1.msra.mxu0 0.0
    %796 = vmatprep.subr.mxu0 0.0
    %797 = vmatpush1.msra.mxu0 0.0
    %798 = vmatprep.subr.mxu0 0.0
    %799 = vmatpush1.msra.mxu0 0.0
    %800 = vmatprep.subr.mxu0 0.0
    %801 = vmatpush1.msra.mxu0 0.0
    %802 = vmatprep.subr.mxu0 0.0
    %803 = vmatpush1.msra.mxu0 0.0
    %804 = vmatprep.subr.mxu0 0.0
    %805 = vmatpush1.msra.mxu0 0.0
    %806 = vmatprep.subr.mxu0 0.0
    %807 = vmatpush1.msra.mxu0 0.0
    %808 = vmatprep.subr.mxu0 0.0
    %809 = vmatpush1.msra.mxu0 0.0
    %810 = vmatprep.subr.mxu0 0.0
    %811 = vmatpush1.msra.mxu0 0.0
    %812 = vmatprep.subr.mxu0 0.0
    %813 = vmatpush1.msra.mxu0 0.0
    %814 = vmatprep.subr.mxu0 0.0
    %815 = vmatpush1.msra.mxu0 0.0
    %816 = vmatprep.mubr.f32.mxu0 0.0
    %817 = vmatmul.mubr.f32.gmra.mrb[0].mxu0 %v750
    %v818 = vpop.f32.mrb[0].mxu0
    %v819 = vadd.f32 0.0, %v818
    %v820 = vpop.f32.mrb[0].mxu0
    %821 = vdwg.mxu0
    %v822 = vadd.f32 %v749, %v819
    %v823 = vxor.u32 %v822, 2147483648
    %v824 = vmul.f32 %v823, 1.442695
    %v825 = vpow.pop %v824
    %v826 = vadd.f32 %v825, 1.0
    %v827 = vrcp.pop %v826
    %v828 = vmul.f32 1.0, %v827
    %v829 = vtanh.pop %v822
    %v830 = vmul.f32 %v828, %v735
    %832 = vrot.lane.b32.xlu0 %v829, 32
    %v833 = vpop.permute.xlu0 %832
    %v835 = vmul.f32 %v828, %v833
    %837 = vrot.lane.b32.xlu0 %v835, 32
    %v838 = vpop.permute.xlu0 %837
    %v840 = vadd.f32 %v830, %v838
    %v841 = vtanh.pop %v840
    %843 = vrot.lane.b32.xlu0 %v841, 32
    %v844 = vpop.permute.xlu0 %843
    %v846 = vmul.f32 %v828, %v844
    %848 = vrot.lane.b32.xlu0 %v846, 64
    %v849 = vpop.permute.xlu0 %848
    %s851 = scalar_lea.vmem [#allocation3], 40
    %852 = vst.msk [vmem:[%s851] sm:$0xff] %vm224, %v849
    %s853 = scalar_lea.vmem [#allocation2], 48
    %v854 = vld [vmem:[%s853] sm:$0xff]
    %v855 = vsel %vm224, %v849, 0
    %857 = vmatprep.subr.mxu0 0.0
    %858 = vmatpush1.msra.mxu0 %v62
    %859 = vmatprep.subr.mxu0 0.0
    %860 = vmatpush1.msra.mxu0 %v63
    %861 = vmatprep.subr.mxu0 0.0
    %862 = vmatpush1.msra.mxu0 %v64
    %863 = vmatprep.subr.mxu0 0.0
    %864 = vmatpush1.msra.mxu0 %v65
    %865 = vmatprep.subr.mxu0 0.0
    %866 = vmatpush1.msra.mxu0 0.0
    %867 = vmatprep.subr.mxu0 0.0
    %868 = vmatpush1.msra.mxu0 0.0
    %869 = vmatprep.subr.mxu0 0.0
    %870 = vmatpush1.msra.mxu0 0.0
    %871 = vmatprep.subr.mxu0 0.0
    %872 = vmatpush1.msra.mxu0 0.0
    %873 = vmatprep.subr.mxu0 0.0
    %874 = vmatpush1.msra.mxu0 0.0
    %875 = vmatprep.subr.mxu0 0.0
    %876 = vmatpush1.msra.mxu0 0.0
    %877 = vmatprep.subr.mxu0 0.0
    %878 = vmatpush1.msra.mxu0 0.0
    %879 = vmatprep.subr.mxu0 0.0
    %880 = vmatpush1.msra.mxu0 0.0
    %881 = vmatprep.subr.mxu0 0.0
    %882 = vmatpush1.msra.mxu0 0.0
    %883 = vmatprep.subr.mxu0 0.0
    %884 = vmatpush1.msra.mxu0 0.0
    %885 = vmatprep.subr.mxu0 0.0
    %886 = vmatpush1.msra.mxu0 0.0
    %887 = vmatprep.subr.mxu0 0.0
    %888 = vmatpush1.msra.mxu0 0.0
    %889 = vmatprep.subr.mxu0 0.0
    %890 = vmatpush1.msra.mxu0 0.0
    %891 = vmatprep.subr.mxu0 0.0
    %892 = vmatpush1.msra.mxu0 0.0
    %893 = vmatprep.subr.mxu0 0.0
    %894 = vmatpush1.msra.mxu0 0.0
    %895 = vmatprep.subr.mxu0 0.0
    %896 = vmatpush1.msra.mxu0 0.0
    %897 = vmatprep.subr.mxu0 0.0
    %898 = vmatpush1.msra.mxu0 0.0
    %899 = vmatprep.subr.mxu0 0.0
    %900 = vmatpush1.msra.mxu0 0.0
    %901 = vmatprep.subr.mxu0 0.0
    %902 = vmatpush1.msra.mxu0 0.0
    %903 = vmatprep.subr.mxu0 0.0
    %904 = vmatpush1.msra.mxu0 0.0
    %905 = vmatprep.subr.mxu0 0.0
    %906 = vmatpush1.msra.mxu0 0.0
    %907 = vmatprep.subr.mxu0 0.0
    %908 = vmatpush1.msra.mxu0 0.0
    %909 = vmatprep.subr.mxu0 0.0
    %910 = vmatpush1.msra.mxu0 0.0
    %911 = vmatprep.subr.mxu0 0.0
    %912 = vmatpush1.msra.mxu0 0.0
    %913 = vmatprep.subr.mxu0 0.0
    %914 = vmatpush1.msra.mxu0 0.0
    %915 = vmatprep.subr.mxu0 0.0
    %916 = vmatpush1.msra.mxu0 0.0
    %917 = vmatprep.subr.mxu0 0.0
    %918 = vmatpush1.msra.mxu0 0.0
    %919 = vmatprep.subr.mxu0 0.0
    %920 = vmatpush1.msra.mxu0 0.0
    %921 = vmatprep.mubr.f32.mxu0 0.0
    %922 = vmatmul.mubr.f32.gmra.mrb[0].mxu0 %v855
    %v923 = vpop.f32.mrb[0].mxu0
    %v924 = vadd.f32 0.0, %v923
    %v925 = vpop.f32.mrb[0].mxu0
    %926 = vdwg.mxu0
    %v927 = vadd.f32 %v854, %v924
    %v928 = vxor.u32 %v927, 2147483648
    %v929 = vmul.f32 %v928, 1.442695
    %v930 = vpow.pop %v929
    %v931 = vadd.f32 %v930, 1.0
    %v932 = vrcp.pop %v931
    %v933 = vmul.f32 1.0, %v932
    %v934 = vtanh.pop %v927
    %v935 = vmul.f32 %v933, %v840
    %937 = vrot.lane.b32.xlu0 %v934, 32
    %v938 = vpop.permute.xlu0 %937
    %v940 = vmul.f32 %v933, %v938
    %942 = vrot.lane.b32.xlu0 %v940, 32
    %v943 = vpop.permute.xlu0 %942
    %v945 = vadd.f32 %v935, %v943
    %v946 = vtanh.pop %v945
    %948 = vrot.lane.b32.xlu0 %v946, 32
    %v949 = vpop.permute.xlu0 %948
    %v951 = vmul.f32 %v933, %v949
    %953 = vrot.lane.b32.xlu0 %v951, 64
    %v954 = vpop.permute.xlu0 %953
    %s956 = scalar_lea.vmem [#allocation3], 48
    %957 = vst.msk [vmem:[%s956] sm:$0xff] %vm224, %v954
    %s958 = scalar_lea.vmem [#allocation2], 56
    %v959 = vld [vmem:[%s958] sm:$0xff]
    %v960 = vsel %vm224, %v954, 0
    %962 = vmatprep.subr.mxu0 0.0
    %963 = vmatpush1.msra.mxu0 %v62
    %964 = vmatprep.subr.mxu0 0.0
    %965 = vmatpush1.msra.mxu0 %v63
    %966 = vmatprep.subr.mxu0 0.0
    %967 = vmatpush1.msra.mxu0 %v64
    %968 = vmatprep.subr.mxu0 0.0
    %969 = vmatpush1.msra.mxu0 %v65
    %970 = vmatprep.subr.mxu0 0.0
    %971 = vmatpush1.msra.mxu0 0.0
    %972 = vmatprep.subr.mxu0 0.0
    %973 = vmatpush1.msra.mxu0 0.0
    %974 = vmatprep.subr.mxu0 0.0
    %975 = vmatpush1.msra.mxu0 0.0
    %976 = vmatprep.subr.mxu0 0.0
    %977 = vmatpush1.msra.mxu0 0.0
    %978 = vmatprep.subr.mxu0 0.0
    %979 = vmatpush1.msra.mxu0 0.0
    %980 = vmatprep.subr.mxu0 0.0
    %981 = vmatpush1.msra.mxu0 0.0
    %982 = vmatprep.subr.mxu0 0.0
    %983 = vmatpush1.msra.mxu0 0.0
    %984 = vmatprep.subr.mxu0 0.0
    %985 = vmatpush1.msra.mxu0 0.0
    %986 = vmatprep.subr.mxu0 0.0
    %987 = vmatpush1.msra.mxu0 0.0
    %988 = vmatprep.subr.mxu0 0.0
    %989 = vmatpush1.msra.mxu0 0.0
    %990 = vmatprep.subr.mxu0 0.0
    %991 = vmatpush1.msra.mxu0 0.0
    %992 = vmatprep.subr.mxu0 0.0
    %993 = vmatpush1.msra.mxu0 0.0
    %994 = vmatprep.subr.mxu0 0.0
    %995 = vmatpush1.msra.mxu0 0.0
    %996 = vmatprep.subr.mxu0 0.0
    %997 = vmatpush1.msra.mxu0 0.0
    %998 = vmatprep.subr.mxu0 0.0
    %999 = vmatpush1.msra.mxu0 0.0
    %1000 = vmatprep.subr.mxu0 0.0
    %1001 = vmatpush1.msra.mxu0 0.0
    %1002 = vmatprep.subr.mxu0 0.0
    %1003 = vmatpush1.msra.mxu0 0.0
    %1004 = vmatprep.subr.mxu0 0.0
    %1005 = vmatpush1.msra.mxu0 0.0
    %1006 = vmatprep.subr.mxu0 0.0
    %1007 = vmatpush1.msra.mxu0 0.0
    %1008 = vmatprep.subr.mxu0 0.0
    %1009 = vmatpush1.msra.mxu0 0.0
    %1010 = vmatprep.subr.mxu0 0.0
    %1011 = vmatpush1.msra.mxu0 0.0
    %1012 = vmatprep.subr.mxu0 0.0
    %1013 = vmatpush1.msra.mxu0 0.0
    %1014 = vmatprep.subr.mxu0 0.0
    %1015 = vmatpush1.msra.mxu0 0.0
    %1016 = vmatprep.subr.mxu0 0.0
    %1017 = vmatpush1.msra.mxu0 0.0
    %1018 = vmatprep.subr.mxu0 0.0
    %1019 = vmatpush1.msra.mxu0 0.0
    %1020 = vmatprep.subr.mxu0 0.0
    %1021 = vmatpush1.msra.mxu0 0.0
    %1022 = vmatprep.subr.mxu0 0.0
    %1023 = vmatpush1.msra.mxu0 0.0
    %1024 = vmatprep.subr.mxu0 0.0
    %1025 = vmatpush1.msra.mxu0 0.0
    %1026 = vmatprep.mubr.f32.mxu0 0.0
    %1027 = vmatmul.mubr.f32.gmra.mrb[0].mxu0 %v960
    %v1028 = vpop.f32.mrb[0].mxu0
    %v1029 = vadd.f32 0.0, %v1028
    %v1030 = vpop.f32.mrb[0].mxu0
    %1031 = vdwg.mxu0
    %v1032 = vadd.f32 %v959, %v1029
    %v1033 = vxor.u32 %v1032, 2147483648
    %v1034 = vmul.f32 %v1033, 1.442695
    %v1035 = vpow.pop %v1034
    %v1036 = vadd.f32 %v1035, 1.0
    %v1037 = vrcp.pop %v1036
    %v1038 = vmul.f32 1.0, %v1037
    %v1039 = vtanh.pop %v1032
    %v1040 = vmul.f32 %v1038, %v945
    %1042 = vrot.lane.b32.xlu0 %v1039, 32
    %v1043 = vpop.permute.xlu0 %1042
    %v1045 = vmul.f32 %v1038, %v1043
    %1047 = vrot.lane.b32.xlu0 %v1045, 32
    %v1048 = vpop.permute.xlu0 %1047
    %v1050 = vadd.f32 %v1040, %v1048
    %v1051 = vtanh.pop %v1050
    %1053 = vrot.lane.b32.xlu0 %v1051, 32
    %v1054 = vpop.permute.xlu0 %1053
    %v1056 = vmul.f32 %v1038, %v1054
    %1058 = vrot.lane.b32.xlu0 %v1056, 64
    %v1059 = vpop.permute.xlu0 %1058
    %s1061 = scalar_lea.vmem [#allocation3], 56
    %1062 = vst.msk [vmem:[%s1061] sm:$0xff] %vm224, %v1059
    %v1063 = vld [vmem:[%s4] sm:$0xff]
    %v1064 = vld [vmem:[%s4 + $0x8] sm:$0xff]
    %v1065 = vld [vmem:[%s4 + $0x10] sm:$0xff]
    %v1066 = vld [vmem:[%s4 + $0x18] sm:$0xff]
    %v1067 = vld [vmem:[#allocation4] sm:$0xff]
    %v1068 = vld [vmem:[#allocation4 + $0x8] sm:$0xff]
    %v1069 = vld [vmem:[#allocation4 + $0x10] sm:$0xff]
    %v1070 = vld [vmem:[#allocation4 + $0x18] sm:$0xff]
    %v1071 = vld [vmem:[%s6] sm:$0x1]
    %v1072 = vld [vmem:[#allocation3] sm:$0xff]
    %v1073 = vld [vmem:[#allocation3 + $0x8] sm:$0xff]
    %v1074 = vld [vmem:[#allocation3 + $0x10] sm:$0xff]
    %v1075 = vld [vmem:[#allocation3 + $0x18] sm:$0xff]
    %v1076 = vld [vmem:[#allocation3 + $0x20] sm:$0xff]
    %v1077 = vld [vmem:[#allocation3 + $0x28] sm:$0xff]
    %v1078 = vld [vmem:[#allocation3 + $0x30] sm:$0xff]
    %v1079 = vld [vmem:[#allocation3 + $0x38] sm:$0xff]
    %v1081 = vlaneseq
    %v1082 = vshrl.u32 %v1081, 7
    %v1083 = vsub.s32 0, %v1082
    %v1084 = vrot.slane %v1071, %v1083
    %v1087 = vsel %vm224, %v1072, 0
    %v1090 = vsel %vm224, %v1073, 0
    %v1093 = vsel %vm224, %v1074, 0
    %v1096 = vsel %vm224, %v1075, 0
    %v1099 = vsel %vm224, %v1076, 0
    %v1102 = vsel %vm224, %v1077, 0
    %v1105 = vsel %vm224, %v1078, 0
    %v1108 = vsel %vm224, %v1079, 0
    %1110 = vmatprep.subr.mxu0 0.0
    %1111 = vmatpush1.msra.mxu0 %v1063
    %1112 = vmatprep.subr.mxu0 0.0
    %1113 = vmatpush1.msra.mxu0 %v1064
    %1114 = vmatprep.subr.mxu0 0.0
    %1115 = vmatpush1.msra.mxu0 %v1065
    %1116 = vmatprep.subr.mxu0 0.0
    %1117 = vmatpush1.msra.mxu0 %v1066
    %1118 = vmatprep.subr.mxu0 0.0
    %1119 = vmatpush1.msra.mxu0 0.0
    %1120 = vmatprep.subr.mxu0 0.0
    %1121 = vmatpush1.msra.mxu0 0.0
    %1122 = vmatprep.subr.mxu0 0.0
    %1123 = vmatpush1.msra.mxu0 0.0
    %1124 = vmatprep.subr.mxu0 0.0
    %1125 = vmatpush1.msra.mxu0 0.0
    %1126 = vmatprep.subr.mxu0 0.0
    %1127 = vmatpush1.msra.mxu0 0.0
    %1128 = vmatprep.subr.mxu0 0.0
    %1129 = vmatpush1.msra.mxu0 0.0
    %1130 = vmatprep.subr.mxu0 0.0
    %1131 = vmatpush1.msra.mxu0 0.0
    %1132 = vmatprep.subr.mxu0 0.0
    %1133 = vmatpush1.msra.mxu0 0.0
    %1134 = vmatprep.subr.mxu0 0.0
    %1135 = vmatpush1.msra.mxu0 0.0
    %1136 = vmatprep.subr.mxu0 0.0
    %1137 = vmatpush1.msra.mxu0 0.0
    %1138 = vmatprep.subr.mxu0 0.0
    %1139 = vmatpush1.msra.mxu0 0.0
    %1140 = vmatprep.subr.mxu0 0.0
    %1141 = vmatpush1.msra.mxu0 0.0
    %1142 = vmatprep.subr.mxu0 0.0
    %1143 = vmatpush1.msra.mxu0 0.0
    %1144 = vmatprep.subr.mxu0 0.0
    %1145 = vmatpush1.msra.mxu0 0.0
    %1146 = vmatprep.subr.mxu0 0.0
    %1147 = vmatpush1.msra.mxu0 0.0
    %1148 = vmatprep.subr.mxu0 0.0
    %1149 = vmatpush1.msra.mxu0 0.0
    %1150 = vmatprep.subr.mxu0 0.0
    %1151 = vmatpush1.msra.mxu0 0.0
    %1152 = vmatprep.subr.mxu0 0.0
    %1153 = vmatpush1.msra.mxu0 0.0
    %1154 = vmatprep.subr.mxu0 0.0
    %1155 = vmatpush1.msra.mxu0 0.0
    %1156 = vmatprep.subr.mxu0 0.0
    %1157 = vmatpush1.msra.mxu0 0.0
    %1158 = vmatprep.subr.mxu0 0.0
    %1159 = vmatpush1.msra.mxu0 0.0
    %1160 = vmatprep.subr.mxu0 0.0
    %1161 = vmatpush1.msra.mxu0 0.0
    %1162 = vmatprep.subr.mxu0 0.0
    %1163 = vmatpush1.msra.mxu0 0.0
    %1164 = vmatprep.subr.mxu0 0.0
    %1165 = vmatpush1.msra.mxu0 0.0
    %1166 = vmatprep.subr.mxu0 0.0
    %1167 = vmatpush1.msra.mxu0 0.0
    %1168 = vmatprep.subr.mxu0 0.0
    %1169 = vmatpush1.msra.mxu0 0.0
    %1170 = vmatprep.subr.mxu0 0.0
    %1171 = vmatpush1.msra.mxu0 0.0
    %1172 = vmatprep.subr.mxu0 0.0
    %1173 = vmatpush1.msra.mxu0 0.0
    %1174 = vmatprep.mubr.f32.mxu0 0.0
    %1175 = vmatmul.mubr.f32.gmra.mrb[0].mxu0 %v1087
    %v1176 = vpop.f32.mrb[0].mxu0
    %v1177 = vadd.f32 %v1084, %v1176
    %v1178 = vpop.f32.mrb[0].mxu0
    %1179 = vmatprep.mubr.f32.mxu0 0.0
    %1180 = vmatmul.mubr.f32.gmra.mrb[0].mxu0 %v1090
    %v1181 = vpop.f32.mrb[0].mxu0
    %v1182 = vadd.f32 %v1084, %v1181
    %v1183 = vpop.f32.mrb[0].mxu0
    %1184 = vmatprep.mubr.f32.mxu0 0.0
    %1185 = vmatmul.mubr.f32.gmra.mrb[0].mxu0 %v1093
    %v1186 = vpop.f32.mrb[0].mxu0
    %v1187 = vadd.f32 %v1084, %v1186
    %v1188 = vpop.f32.mrb[0].mxu0
    %1189 = vmatprep.mubr.f32.mxu0 0.0
    %1190 = vmatmul.mubr.f32.gmra.mrb[0].mxu0 %v1096
    %v1191 = vpop.f32.mrb[0].mxu0
    %v1192 = vadd.f32 %v1084, %v1191
    %v1193 = vpop.f32.mrb[0].mxu0
    %1194 = vmatprep.mubr.f32.mxu0 0.0
    %1195 = vmatmul.mubr.f32.gmra.mrb[0].mxu0 %v1099
    %v1196 = vpop.f32.mrb[0].mxu0
    %v1197 = vadd.f32 %v1084, %v1196
    %v1198 = vpop.f32.mrb[0].mxu0
    %1199 = vmatprep.mubr.f32.mxu0 0.0
    %1200 = vmatmul.mubr.f32.gmra.mrb[0].mxu0 %v1102
    %v1201 = vpop.f32.mrb[0].mxu0
    %v1202 = vadd.f32 %v1084, %v1201
    %v1203 = vpop.f32.mrb[0].mxu0
    %1204 = vmatprep.mubr.f32.mxu0 0.0
    %1205 = vmatmul.mubr.f32.gmra.mrb[0].mxu0 %v1105
    %v1206 = vpop.f32.mrb[0].mxu0
    %v1207 = vadd.f32 %v1084, %v1206
    %v1208 = vpop.f32.mrb[0].mxu0
    %1209 = vmatprep.mubr.f32.mxu0 0.0
    %1210 = vmatmul.mubr.f32.gmra.mrb[0].mxu0 %v1108
    %v1211 = vpop.f32.mrb[0].mxu0
    %v1212 = vadd.f32 %v1084, %v1211
    %v1213 = vpop.f32.mrb[0].mxu0
    %1214 = vdwg.mxu0
    %1215 = vst [vmem:[#allocation2] sm:$0xff] %v1177
    %1216 = vst [vmem:[#allocation2 + $0x8] sm:$0xff] %v1182
    %1217 = vst [vmem:[#allocation2 + $0x10] sm:$0xff] %v1187
    %1218 = vst [vmem:[#allocation2 + $0x18] sm:$0xff] %v1192
    %1219 = vst [vmem:[#allocation2 + $0x20] sm:$0xff] %v1197
    %1220 = vst [vmem:[#allocation2 + $0x28] sm:$0xff] %v1202
    %1221 = vst [vmem:[#allocation2 + $0x30] sm:$0xff] %v1207
    %1222 = vst [vmem:[#allocation2 + $0x38] sm:$0xff] %v1212
    %v1223 = vld [vmem:[#allocation2] sm:$0xff]
    %1224 = vmatprep.subr.mxu0 0.0
    %1225 = vmatpush1.msra.mxu0 %v1067
    %1226 = vmatprep.subr.mxu0 0.0
    %1227 = vmatpush1.msra.mxu0 %v1068
    %1228 = vmatprep.subr.mxu0 0.0
    %1229 = vmatpush1.msra.mxu0 %v1069
    %1230 = vmatprep.subr.mxu0 0.0
    %1231 = vmatpush1.msra.mxu0 %v1070
    %1232 = vmatprep.subr.mxu0 0.0
    %1233 = vmatpush1.msra.mxu0 0.0
    %1234 = vmatprep.subr.mxu0 0.0
    %1235 = vmatpush1.msra.mxu0 0.0
    %1236 = vmatprep.subr.mxu0 0.0
    %1237 = vmatpush1.msra.mxu0 0.0
    %1238 = vmatprep.subr.mxu0 0.0
    %1239 = vmatpush1.msra.mxu0 0.0
    %1240 = vmatprep.subr.mxu0 0.0
    %1241 = vmatpush1.msra.mxu0 0.0
    %1242 = vmatprep.subr.mxu0 0.0
    %1243 = vmatpush1.msra.mxu0 0.0
    %1244 = vmatprep.subr.mxu0 0.0
    %1245 = vmatpush1.msra.mxu0 0.0
    %1246 = vmatprep.subr.mxu0 0.0
    %1247 = vmatpush1.msra.mxu0 0.0
    %1248 = vmatprep.subr.mxu0 0.0
    %1249 = vmatpush1.msra.mxu0 0.0
    %1250 = vmatprep.subr.mxu0 0.0
    %1251 = vmatpush1.msra.mxu0 0.0
    %1252 = vmatprep.subr.mxu0 0.0
    %1253 = vmatpush1.msra.mxu0 0.0
    %1254 = vmatprep.subr.mxu0 0.0
    %1255 = vmatpush1.msra.mxu0 0.0
    %1256 = vmatprep.subr.mxu0 0.0
    %1257 = vmatpush1.msra.mxu0 0.0
    %1258 = vmatprep.subr.mxu0 0.0
    %1259 = vmatpush1.msra.mxu0 0.0
    %1260 = vmatprep.subr.mxu0 0.0
    %1261 = vmatpush1.msra.mxu0 0.0
    %1262 = vmatprep.subr.mxu0 0.0
    %1263 = vmatpush1.msra.mxu0 0.0
    %1264 = vmatprep.subr.mxu0 0.0
    %1265 = vmatpush1.msra.mxu0 0.0
    %1266 = vmatprep.subr.mxu0 0.0
    %1267 = vmatpush1.msra.mxu0 0.0
    %1268 = vmatprep.subr.mxu0 0.0
    %1269 = vmatpush1.msra.mxu0 0.0
    %1270 = vmatprep.subr.mxu0 0.0
    %1271 = vmatpush1.msra.mxu0 0.0
    %1272 = vmatprep.subr.mxu0 0.0
    %1273 = vmatpush1.msra.mxu0 0.0
    %1274 = vmatprep.subr.mxu0 0.0
    %1275 = vmatpush1.msra.mxu0 0.0
    %1276 = vmatprep.subr.mxu0 0.0
    %1277 = vmatpush1.msra.mxu0 0.0
    %1278 = vmatprep.subr.mxu0 0.0
    %1279 = vmatpush1.msra.mxu0 0.0
    %1280 = vmatprep.subr.mxu0 0.0
    %1281 = vmatpush1.msra.mxu0 0.0
    %1282 = vmatprep.subr.mxu0 0.0
    %1283 = vmatpush1.msra.mxu0 0.0
    %1284 = vmatprep.subr.mxu0 0.0
    %1285 = vmatpush1.msra.mxu0 0.0
    %1286 = vmatprep.subr.mxu0 0.0
    %1287 = vmatpush1.msra.mxu0 0.0
    %1288 = vmatprep.mubr.f32.mxu0 0.0
    %1289 = vmatmul.mubr.f32.gmra.mrb[0].mxu0 %v226
    %v1290 = vpop.f32.mrb[0].mxu0
    %v1291 = vadd.f32 0.0, %v1290
    %v1292 = vpop.f32.mrb[0].mxu0
    %1293 = vdwg.mxu0
    %v1294 = vadd.f32 %v1223, %v1291
    %v1295 = vxor.u32 %v1294, 2147483648
    %v1296 = vmul.f32 %v1295, 1.442695
    %v1297 = vpow.pop %v1296
    %v1298 = vadd.f32 %v1297, 1.0
    %v1299 = vrcp.pop %v1298
    %v1300 = vmul.f32 1.0, %v1299
    %v1301 = vtanh.pop %v1294
    %v1302 = vmul.f32 %v1300, 0.0
    %1304 = vrot.lane.b32.xlu0 %v1301, 32
    %v1305 = vpop.permute.xlu0 %1304
    %v1307 = vmul.f32 %v1300, %v1305
    %1309 = vrot.lane.b32.xlu0 %v1307, 32
    %v1310 = vpop.permute.xlu0 %1309
    %v1312 = vadd.f32 %v1302, %v1310
    %v1313 = vtanh.pop %v1312
    %1315 = vrot.lane.b32.xlu0 %v1313, 32
    %v1316 = vpop.permute.xlu0 %1315
    %v1318 = vmul.f32 %v1300, %v1316
    %v1319 = vld [vmem:[%s328] sm:$0xff]
    %1321 = vrot.lane.b32.xlu0 %v1318, 64
    %v1322 = vpop.permute.xlu0 %1321
    %v1323 = vsel %vm224, %v1322, 0
    %1325 = vmatprep.subr.mxu0 0.0
    %1326 = vmatpush1.msra.mxu0 %v1067
    %1327 = vmatprep.subr.mxu0 0.0
    %1328 = vmatpush1.msra.mxu0 %v1068
    %1329 = vmatprep.subr.mxu0 0.0
    %1330 = vmatpush1.msra.mxu0 %v1069
    %1331 = vmatprep.subr.mxu0 0.0
    %1332 = vmatpush1.msra.mxu0 %v1070
    %1333 = vmatprep.subr.mxu0 0.0
    %1334 = vmatpush1.msra.mxu0 0.0
    %1335 = vmatprep.subr.mxu0 0.0
    %1336 = vmatpush1.msra.mxu0 0.0
    %1337 = vmatprep.subr.mxu0 0.0
    %1338 = vmatpush1.msra.mxu0 0.0
    %1339 = vmatprep.subr.mxu0 0.0
    %1340 = vmatpush1.msra.mxu0 0.0
    %1341 = vmatprep.subr.mxu0 0.0
    %1342 = vmatpush1.msra.mxu0 0.0
    %1343 = vmatprep.subr.mxu0 0.0
    %1344 = vmatpush1.msra.mxu0 0.0
    %1345 = vmatprep.subr.mxu0 0.0
    %1346 = vmatpush1.msra.mxu0 0.0
    %1347 = vmatprep.subr.mxu0 0.0
    %1348 = vmatpush1.msra.mxu0 0.0
    %1349 = vmatprep.subr.mxu0 0.0
    %1350 = vmatpush1.msra.mxu0 0.0
    %1351 = vmatprep.subr.mxu0 0.0
    %1352 = vmatpush1.msra.mxu0 0.0
    %1353 = vmatprep.subr.mxu0 0.0
    %1354 = vmatpush1.msra.mxu0 0.0
    %1355 = vmatprep.subr.mxu0 0.0
    %1356 = vmatpush1.msra.mxu0 0.0
    %1357 = vmatprep.subr.mxu0 0.0
    %1358 = vmatpush1.msra.mxu0 0.0
    %1359 = vmatprep.subr.mxu0 0.0
    %1360 = vmatpush1.msra.mxu0 0.0
    %1361 = vmatprep.subr.mxu0 0.0
    %1362 = vmatpush1.msra.mxu0 0.0
    %1363 = vmatprep.subr.mxu0 0.0
    %1364 = vmatpush1.msra.mxu0 0.0
    %1365 = vmatprep.subr.mxu0 0.0
    %1366 = vmatpush1.msra.mxu0 0.0
    %1367 = vmatprep.subr.mxu0 0.0
    %1368 = vmatpush1.msra.mxu0 0.0
    %1369 = vmatprep.subr.mxu0 0.0
    %1370 = vmatpush1.msra.mxu0 0.0
    %1371 = vmatprep.subr.mxu0 0.0
    %1372 = vmatpush1.msra.mxu0 0.0
    %1373 = vmatprep.subr.mxu0 0.0
    %1374 = vmatpush1.msra.mxu0 0.0
    %1375 = vmatprep.subr.mxu0 0.0
    %1376 = vmatpush1.msra.mxu0 0.0
    %1377 = vmatprep.subr.mxu0 0.0
    %1378 = vmatpush1.msra.mxu0 0.0
    %1379 = vmatprep.subr.mxu0 0.0
    %1380 = vmatpush1.msra.mxu0 0.0
    %1381 = vmatprep.subr.mxu0 0.0
    %1382 = vmatpush1.msra.mxu0 0.0
    %1383 = vmatprep.subr.mxu0 0.0
    %1384 = vmatpush1.msra.mxu0 0.0
    %1385 = vmatprep.subr.mxu0 0.0
    %1386 = vmatpush1.msra.mxu0 0.0
    %1387 = vmatprep.subr.mxu0 0.0
    %1388 = vmatpush1.msra.mxu0 0.0
    %1389 = vmatprep.mubr.f32.mxu0 0.0
    %1390 = vmatmul.mubr.f32.gmra.mrb[0].mxu0 %v1323
    %v1391 = vpop.f32.mrb[0].mxu0
    %v1392 = vadd.f32 0.0, %v1391
    %v1393 = vpop.f32.mrb[0].mxu0
    %1394 = vdwg.mxu0
    %v1395 = vadd.f32 %v1319, %v1392
    %v1396 = vxor.u32 %v1395, 2147483648
    %v1397 = vmul.f32 %v1396, 1.442695
    %v1398 = vpow.pop %v1397
    %v1399 = vadd.f32 %v1398, 1.0
    %v1400 = vrcp.pop %v1399
    %v1401 = vmul.f32 1.0, %v1400
    %v1402 = vtanh.pop %v1395
    %v1403 = vmul.f32 %v1401, %v1312
    %1405 = vrot.lane.b32.xlu0 %v1402, 32
    %v1406 = vpop.permute.xlu0 %1405
    %v1408 = vmul.f32 %v1401, %v1406
    %1410 = vrot.lane.b32.xlu0 %v1408, 32
    %v1411 = vpop.permute.xlu0 %1410
    %v1413 = vadd.f32 %v1403, %v1411
    %v1414 = vtanh.pop %v1413
    %1416 = vrot.lane.b32.xlu0 %v1414, 32
    %v1417 = vpop.permute.xlu0 %1416
    %v1419 = vmul.f32 %v1401, %v1417
    %v1420 = vld [vmem:[%s433] sm:$0xff]
    %1422 = vrot.lane.b32.xlu0 %v1419, 64
    %v1423 = vpop.permute.xlu0 %1422
    %v1424 = vsel %vm224, %v1423, 0
    %1426 = vmatprep.subr.mxu0 0.0
    %1427 = vmatpush1.msra.mxu0 %v1067
    %1428 = vmatprep.subr.mxu0 0.0
    %1429 = vmatpush1.msra.mxu0 %v1068
    %1430 = vmatprep.subr.mxu0 0.0
    %1431 = vmatpush1.msra.mxu0 %v1069
    %1432 = vmatprep.subr.mxu0 0.0
    %1433 = vmatpush1.msra.mxu0 %v1070
    %1434 = vmatprep.subr.mxu0 0.0
    %1435 = vmatpush1.msra.mxu0 0.0
    %1436 = vmatprep.subr.mxu0 0.0
    %1437 = vmatpush1.msra.mxu0 0.0
    %1438 = vmatprep.subr.mxu0 0.0
    %1439 = vmatpush1.msra.mxu0 0.0
    %1440 = vmatprep.subr.mxu0 0.0
    %1441 = vmatpush1.msra.mxu0 0.0
    %1442 = vmatprep.subr.mxu0 0.0
    %1443 = vmatpush1.msra.mxu0 0.0
    %1444 = vmatprep.subr.mxu0 0.0
    %1445 = vmatpush1.msra.mxu0 0.0
    %1446 = vmatprep.subr.mxu0 0.0
    %1447 = vmatpush1.msra.mxu0 0.0
    %1448 = vmatprep.subr.mxu0 0.0
    %1449 = vmatpush1.msra.mxu0 0.0
    %1450 = vmatprep.subr.mxu0 0.0
    %1451 = vmatpush1.msra.mxu0 0.0
    %1452 = vmatprep.subr.mxu0 0.0
    %1453 = vmatpush1.msra.mxu0 0.0
    %1454 = vmatprep.subr.mxu0 0.0
    %1455 = vmatpush1.msra.mxu0 0.0
    %1456 = vmatprep.subr.mxu0 0.0
    %1457 = vmatpush1.msra.mxu0 0.0
    %1458 = vmatprep.subr.mxu0 0.0
    %1459 = vmatpush1.msra.mxu0 0.0
    %1460 = vmatprep.subr.mxu0 0.0
    %1461 = vmatpush1.msra.mxu0 0.0
    %1462 = vmatprep.subr.mxu0 0.0
    %1463 = vmatpush1.msra.mxu0 0.0
    %1464 = vmatprep.subr.mxu0 0.0
    %1465 = vmatpush1.msra.mxu0 0.0
    %1466 = vmatprep.subr.mxu0 0.0
    %1467 = vmatpush1.msra.mxu0 0.0
    %1468 = vmatprep.subr.mxu0 0.0
    %1469 = vmatpush1.msra.mxu0 0.0
    %1470 = vmatprep.subr.mxu0 0.0
    %1471 = vmatpush1.msra.mxu0 0.0
    %1472 = vmatprep.subr.mxu0 0.0
    %1473 = vmatpush1.msra.mxu0 0.0
    %1474 = vmatprep.subr.mxu0 0.0
    %1475 = vmatpush1.msra.mxu0 0.0
    %1476 = vmatprep.subr.mxu0 0.0
    %1477 = vmatpush1.msra.mxu0 0.0
    %1478 = vmatprep.subr.mxu0 0.0
    %1479 = vmatpush1.msra.mxu0 0.0
    %1480 = vmatprep.subr.mxu0 0.0
    %1481 = vmatpush1.msra.mxu0 0.0
    %1482 = vmatprep.subr.mxu0 0.0
    %1483 = vmatpush1.msra.mxu0 0.0
    %1484 = vmatprep.subr.mxu0 0.0
    %1485 = vmatpush1.msra.mxu0 0.0
    %1486 = vmatprep.subr.mxu0 0.0
    %1487 = vmatpush1.msra.mxu0 0.0
    %1488 = vmatprep.subr.mxu0 0.0
    %1489 = vmatpush1.msra.mxu0 0.0
    %1490 = vmatprep.mubr.f32.mxu0 0.0
    %1491 = vmatmul.mubr.f32.gmra.mrb[0].mxu0 %v1424
    %v1492 = vpop.f32.mrb[0].mxu0
    %v1493 = vadd.f32 0.0, %v1492
    %v1494 = vpop.f32.mrb[0].mxu0
    %1495 = vdwg.mxu0
    %v1496 = vadd.f32 %v1420, %v1493
    %v1497 = vxor.u32 %v1496, 2147483648
    %v1498 = vmul.f32 %v1497, 1.442695
    %v1499 = vpow.pop %v1498
    %v1500 = vadd.f32 %v1499, 1.0
    %v1501 = vrcp.pop %v1500
    %v1502 = vmul.f32 1.0, %v1501
    %v1503 = vtanh.pop %v1496
    %v1504 = vmul.f32 %v1502, %v1413
    %1506 = vrot.lane.b32.xlu0 %v1503, 32
    %v1507 = vpop.permute.xlu0 %1506
    %v1509 = vmul.f32 %v1502, %v1507
    %1511 = vrot.lane.b32.xlu0 %v1509, 32
    %v1512 = vpop.permute.xlu0 %1511
    %v1514 = vadd.f32 %v1504, %v1512
    %v1515 = vtanh.pop %v1514
    %1517 = vrot.lane.b32.xlu0 %v1515, 32
    %v1518 = vpop.permute.xlu0 %1517
    %v1520 = vmul.f32 %v1502, %v1518
    %v1521 = vld [vmem:[%s538] sm:$0xff]
    %1523 = vrot.lane.b32.xlu0 %v1520, 64
    %v1524 = vpop.permute.xlu0 %1523
    %v1525 = vsel %vm224, %v1524, 0
    %1527 = vmatprep.subr.mxu0 0.0
    %1528 = vmatpush1.msra.mxu0 %v1067
    %1529 = vmatprep.subr.mxu0 0.0
    %1530 = vmatpush1.msra.mxu0 %v1068
    %1531 = vmatprep.subr.mxu0 0.0
    %1532 = vmatpush1.msra.mxu0 %v1069
    %1533 = vmatprep.subr.mxu0 0.0
    %1534 = vmatpush1.msra.mxu0 %v1070
    %1535 = vmatprep.subr.mxu0 0.0
    %1536 = vmatpush1.msra.mxu0 0.0
    %1537 = vmatprep.subr.mxu0 0.0
    %1538 = vmatpush1.msra.mxu0 0.0
    %1539 = vmatprep.subr.mxu0 0.0
    %1540 = vmatpush1.msra.mxu0 0.0
    %1541 = vmatprep.subr.mxu0 0.0
    %1542 = vmatpush1.msra.mxu0 0.0
    %1543 = vmatprep.subr.mxu0 0.0
    %1544 = vmatpush1.msra.mxu0 0.0
    %1545 = vmatprep.subr.mxu0 0.0
    %1546 = vmatpush1.msra.mxu0 0.0
    %1547 = vmatprep.subr.mxu0 0.0
    %1548 = vmatpush1.msra.mxu0 0.0
    %1549 = vmatprep.subr.mxu0 0.0
    %1550 = vmatpush1.msra.mxu0 0.0
    %1551 = vmatprep.subr.mxu0 0.0
    %1552 = vmatpush1.msra.mxu0 0.0
    %1553 = vmatprep.subr.mxu0 0.0
    %1554 = vmatpush1.msra.mxu0 0.0
    %1555 = vmatprep.subr.mxu0 0.0
    %1556 = vmatpush1.msra.mxu0 0.0
    %1557 = vmatprep.subr.mxu0 0.0
    %1558 = vmatpush1.msra.mxu0 0.0
    %1559 = vmatprep.subr.mxu0 0.0
    %1560 = vmatpush1.msra.mxu0 0.0
    %1561 = vmatprep.subr.mxu0 0.0
    %1562 = vmatpush1.msra.mxu0 0.0
    %1563 = vmatprep.subr.mxu0 0.0
    %1564 = vmatpush1.msra.mxu0 0.0
    %1565 = vmatprep.subr.mxu0 0.0
    %1566 = vmatpush1.msra.mxu0 0.0
    %1567 = vmatprep.subr.mxu0 0.0
    %1568 = vmatpush1.msra.mxu0 0.0
    %1569 = vmatprep.subr.mxu0 0.0
    %1570 = vmatpush1.msra.mxu0 0.0
    %1571 = vmatprep.subr.mxu0 0.0
    %1572 = vmatpush1.msra.mxu0 0.0
    %1573 = vmatprep.subr.mxu0 0.0
    %1574 = vmatpush1.msra.mxu0 0.0
    %1575 = vmatprep.subr.mxu0 0.0
    %1576 = vmatpush1.msra.mxu0 0.0
    %1577 = vmatprep.subr.mxu0 0.0
    %1578 = vmatpush1.msra.mxu0 0.0
    %1579 = vmatprep.subr.mxu0 0.0
    %1580 = vmatpush1.msra.mxu0 0.0
    %1581 = vmatprep.subr.mxu0 0.0
    %1582 = vmatpush1.msra.mxu0 0.0
    %1583 = vmatprep.subr.mxu0 0.0
    %1584 = vmatpush1.msra.mxu0 0.0
    %1585 = vmatprep.subr.mxu0 0.0
    %1586 = vmatpush1.msra.mxu0 0.0
    %1587 = vmatprep.subr.mxu0 0.0
    %1588 = vmatpush1.msra.mxu0 0.0
    %1589 = vmatprep.subr.mxu0 0.0
    %1590 = vmatpush1.msra.mxu0 0.0
    %1591 = vmatprep.mubr.f32.mxu0 0.0
    %1592 = vmatmul.mubr.f32.gmra.mrb[0].mxu0 %v1525
    %v1593 = vpop.f32.mrb[0].mxu0
    %v1594 = vadd.f32 0.0, %v1593
    %v1595 = vpop.f32.mrb[0].mxu0
    %1596 = vdwg.mxu0
    %v1597 = vadd.f32 %v1521, %v1594
    %v1598 = vxor.u32 %v1597, 2147483648
    %v1599 = vmul.f32 %v1598, 1.442695
    %v1600 = vpow.pop %v1599
    %v1601 = vadd.f32 %v1600, 1.0
    %v1602 = vrcp.pop %v1601
    %v1603 = vmul.f32 1.0, %v1602
    %v1604 = vtanh.pop %v1597
    %v1605 = vmul.f32 %v1603, %v1514
    %1607 = vrot.lane.b32.xlu0 %v1604, 32
    %v1608 = vpop.permute.xlu0 %1607
    %v1610 = vmul.f32 %v1603, %v1608
    %1612 = vrot.lane.b32.xlu0 %v1610, 32
    %v1613 = vpop.permute.xlu0 %1612
    %v1615 = vadd.f32 %v1605, %v1613
    %v1616 = vtanh.pop %v1615
    %1618 = vrot.lane.b32.xlu0 %v1616, 32
    %v1619 = vpop.permute.xlu0 %1618
    %v1621 = vmul.f32 %v1603, %v1619
    %v1622 = vld [vmem:[%s643] sm:$0xff]
    %1624 = vrot.lane.b32.xlu0 %v1621, 64
    %v1625 = vpop.permute.xlu0 %1624
    %v1626 = vsel %vm224, %v1625, 0
    %1628 = vmatprep.subr.mxu0 0.0
    %1629 = vmatpush1.msra.mxu0 %v1067
    %1630 = vmatprep.subr.mxu0 0.0
    %1631 = vmatpush1.msra.mxu0 %v1068
    %1632 = vmatprep.subr.mxu0 0.0
    %1633 = vmatpush1.msra.mxu0 %v1069
    %1634 = vmatprep.subr.mxu0 0.0
    %1635 = vmatpush1.msra.mxu0 %v1070
    %1636 = vmatprep.subr.mxu0 0.0
    %1637 = vmatpush1.msra.mxu0 0.0
    %1638 = vmatprep.subr.mxu0 0.0
    %1639 = vmatpush1.msra.mxu0 0.0
    %1640 = vmatprep.subr.mxu0 0.0
    %1641 = vmatpush1.msra.mxu0 0.0
    %1642 = vmatprep.subr.mxu0 0.0
    %1643 = vmatpush1.msra.mxu0 0.0
    %1644 = vmatprep.subr.mxu0 0.0
    %1645 = vmatpush1.msra.mxu0 0.0
    %1646 = vmatprep.subr.mxu0 0.0
    %1647 = vmatpush1.msra.mxu0 0.0
    %1648 = vmatprep.subr.mxu0 0.0
    %1649 = vmatpush1.msra.mxu0 0.0
    %1650 = vmatprep.subr.mxu0 0.0
    %1651 = vmatpush1.msra.mxu0 0.0
    %1652 = vmatprep.subr.mxu0 0.0
    %1653 = vmatpush1.msra.mxu0 0.0
    %1654 = vmatprep.subr.mxu0 0.0
    %1655 = vmatpush1.msra.mxu0 0.0
    %1656 = vmatprep.subr.mxu0 0.0
    %1657 = vmatpush1.msra.mxu0 0.0
    %1658 = vmatprep.subr.mxu0 0.0
    %1659 = vmatpush1.msra.mxu0 0.0
    %1660 = vmatprep.subr.mxu0 0.0
    %1661 = vmatpush1.msra.mxu0 0.0
    %1662 = vmatprep.subr.mxu0 0.0
    %1663 = vmatpush1.msra.mxu0 0.0
    %1664 = vmatprep.subr.mxu0 0.0
    %1665 = vmatpush1.msra.mxu0 0.0
    %1666 = vmatprep.subr.mxu0 0.0
    %1667 = vmatpush1.msra.mxu0 0.0
    %1668 = vmatprep.subr.mxu0 0.0
    %1669 = vmatpush1.msra.mxu0 0.0
    %1670 = vmatprep.subr.mxu0 0.0
    %1671 = vmatpush1.msra.mxu0 0.0
    %1672 = vmatprep.subr.mxu0 0.0
    %1673 = vmatpush1.msra.mxu0 0.0
    %1674 = vmatprep.subr.mxu0 0.0
    %1675 = vmatpush1.msra.mxu0 0.0
    %1676 = vmatprep.subr.mxu0 0.0
    %1677 = vmatpush1.msra.mxu0 0.0
    %1678 = vmatprep.subr.mxu0 0.0
    %1679 = vmatpush1.msra.mxu0 0.0
    %1680 = vmatprep.subr.mxu0 0.0
    %1681 = vmatpush1.msra.mxu0 0.0
    %1682 = vmatprep.subr.mxu0 0.0
    %1683 = vmatpush1.msra.mxu0 0.0
    %1684 = vmatprep.subr.mxu0 0.0
    %1685 = vmatpush1.msra.mxu0 0.0
    %1686 = vmatprep.subr.mxu0 0.0
    %1687 = vmatpush1.msra.mxu0 0.0
    %1688 = vmatprep.subr.mxu0 0.0
    %1689 = vmatpush1.msra.mxu0 0.0
    %1690 = vmatprep.subr.mxu0 0.0
    %1691 = vmatpush1.msra.mxu0 0.0
    %1692 = vmatprep.mubr.f32.mxu0 0.0
    %1693 = vmatmul.mubr.f32.gmra.mrb[0].mxu0 %v1626
    %v1694 = vpop.f32.mrb[0].mxu0
    %v1695 = vadd.f32 0.0, %v1694
    %v1696 = vpop.f32.mrb[0].mxu0
    %1697 = vdwg.mxu0
    %v1698 = vadd.f32 %v1622, %v1695
    %v1699 = vxor.u32 %v1698, 2147483648
    %v1700 = vmul.f32 %v1699, 1.442695
    %v1701 = vpow.pop %v1700
    %v1702 = vadd.f32 %v1701, 1.0
    %v1703 = vrcp.pop %v1702
    %v1704 = vmul.f32 1.0, %v1703
    %v1705 = vtanh.pop %v1698
    %v1706 = vmul.f32 %v1704, %v1615
    %1708 = vrot.lane.b32.xlu0 %v1705, 32
    %v1709 = vpop.permute.xlu0 %1708
    %v1711 = vmul.f32 %v1704, %v1709
    %1713 = vrot.lane.b32.xlu0 %v1711, 32
    %v1714 = vpop.permute.xlu0 %1713
    %v1716 = vadd.f32 %v1706, %v1714
    %v1717 = vtanh.pop %v1716
    %1719 = vrot.lane.b32.xlu0 %v1717, 32
    %v1720 = vpop.permute.xlu0 %1719
    %v1722 = vmul.f32 %v1704, %v1720
    %v1723 = vld [vmem:[%s748] sm:$0xff]
    %1725 = vrot.lane.b32.xlu0 %v1722, 64
    %v1726 = vpop.permute.xlu0 %1725
    %v1727 = vsel %vm224, %v1726, 0
    %1729 = vmatprep.subr.mxu0 0.0
    %1730 = vmatpush1.msra.mxu0 %v1067
    %1731 = vmatprep.subr.mxu0 0.0
    %1732 = vmatpush1.msra.mxu0 %v1068
    %1733 = vmatprep.subr.mxu0 0.0
    %1734 = vmatpush1.msra.mxu0 %v1069
    %1735 = vmatprep.subr.mxu0 0.0
    %1736 = vmatpush1.msra.mxu0 %v1070
    %1737 = vmatprep.subr.mxu0 0.0
    %1738 = vmatpush1.msra.mxu0 0.0
    %1739 = vmatprep.subr.mxu0 0.0
    %1740 = vmatpush1.msra.mxu0 0.0
    %1741 = vmatprep.subr.mxu0 0.0
    %1742 = vmatpush1.msra.mxu0 0.0
    %1743 = vmatprep.subr.mxu0 0.0
    %1744 = vmatpush1.msra.mxu0 0.0
    %1745 = vmatprep.subr.mxu0 0.0
    %1746 = vmatpush1.msra.mxu0 0.0
    %1747 = vmatprep.subr.mxu0 0.0
    %1748 = vmatpush1.msra.mxu0 0.0
    %1749 = vmatprep.subr.mxu0 0.0
    %1750 = vmatpush1.msra.mxu0 0.0
    %1751 = vmatprep.subr.mxu0 0.0
    %1752 = vmatpush1.msra.mxu0 0.0
    %1753 = vmatprep.subr.mxu0 0.0
    %1754 = vmatpush1.msra.mxu0 0.0
    %1755 = vmatprep.subr.mxu0 0.0
    %1756 = vmatpush1.msra.mxu0 0.0
    %1757 = vmatprep.subr.mxu0 0.0
    %1758 = vmatpush1.msra.mxu0 0.0
    %1759 = vmatprep.subr.mxu0 0.0
    %1760 = vmatpush1.msra.mxu0 0.0
    %1761 = vmatprep.subr.mxu0 0.0
    %1762 = vmatpush1.msra.mxu0 0.0
    %1763 = vmatprep.subr.mxu0 0.0
    %1764 = vmatpush1.msra.mxu0 0.0
    %1765 = vmatprep.subr.mxu0 0.0
    %1766 = vmatpush1.msra.mxu0 0.0
    %1767 = vmatprep.subr.mxu0 0.0
    %1768 = vmatpush1.msra.mxu0 0.0
    %1769 = vmatprep.subr.mxu0 0.0
    %1770 = vmatpush1.msra.mxu0 0.0
    %1771 = vmatprep.subr.mxu0 0.0
    %1772 = vmatpush1.msra.mxu0 0.0
    %1773 = vmatprep.subr.mxu0 0.0
    %1774 = vmatpush1.msra.mxu0 0.0
    %1775 = vmatprep.subr.mxu0 0.0
    %1776 = vmatpush1.msra.mxu0 0.0
    %1777 = vmatprep.subr.mxu0 0.0
    %1778 = vmatpush1.msra.mxu0 0.0
    %1779 = vmatprep.subr.mxu0 0.0
    %1780 = vmatpush1.msra.mxu0 0.0
    %1781 = vmatprep.subr.mxu0 0.0
    %1782 = vmatpush1.msra.mxu0 0.0
    %1783 = vmatprep.subr.mxu0 0.0
    %1784 = vmatpush1.msra.mxu0 0.0
    %1785 = vmatprep.subr.mxu0 0.0
    %1786 = vmatpush1.msra.mxu0 0.0
    %1787 = vmatprep.subr.mxu0 0.0
    %1788 = vmatpush1.msra.mxu0 0.0
    %1789 = vmatprep.subr.mxu0 0.0
    %1790 = vmatpush1.msra.mxu0 0.0
    %1791 = vmatprep.subr.mxu0 0.0
    %1792 = vmatpush1.msra.mxu0 0.0
    %1793 = vmatprep.mubr.f32.mxu0 0.0
    %1794 = vmatmul.mubr.f32.gmra.mrb[0].mxu0 %v1727
    %v1795 = vpop.f32.mrb[0].mxu0
    %v1796 = vadd.f32 0.0, %v1795
    %v1797 = vpop.f32.mrb[0].mxu0
    %1798 = vdwg.mxu0
    %v1799 = vadd.f32 %v1723, %v1796
    %v1800 = vxor.u32 %v1799, 2147483648
    %v1801 = vmul.f32 %v1800, 1.442695
    %v1802 = vpow.pop %v1801
    %v1803 = vadd.f32 %v1802, 1.0
    %v1804 = vrcp.pop %v1803
    %v1805 = vmul.f32 1.0, %v1804
    %v1806 = vtanh.pop %v1799
    %v1807 = vmul.f32 %v1805, %v1716
    %1809 = vrot.lane.b32.xlu0 %v1806, 32
    %v1810 = vpop.permute.xlu0 %1809
    %v1812 = vmul.f32 %v1805, %v1810
    %1814 = vrot.lane.b32.xlu0 %v1812, 32
    %v1815 = vpop.permute.xlu0 %1814
    %v1817 = vadd.f32 %v1807, %v1815
    %v1818 = vtanh.pop %v1817
    %1820 = vrot.lane.b32.xlu0 %v1818, 32
    %v1821 = vpop.permute.xlu0 %1820
    %v1823 = vmul.f32 %v1805, %v1821
    %v1824 = vld [vmem:[%s853] sm:$0xff]
    %1826 = vrot.lane.b32.xlu0 %v1823, 64
    %v1827 = vpop.permute.xlu0 %1826
    %v1828 = vsel %vm224, %v1827, 0
    %1830 = vmatprep.subr.mxu0 0.0
    %1831 = vmatpush1.msra.mxu0 %v1067
    %1832 = vmatprep.subr.mxu0 0.0
    %1833 = vmatpush1.msra.mxu0 %v1068
    %1834 = vmatprep.subr.mxu0 0.0
    %1835 = vmatpush1.msra.mxu0 %v1069
    %1836 = vmatprep.subr.mxu0 0.0
    %1837 = vmatpush1.msra.mxu0 %v1070
    %1838 = vmatprep.subr.mxu0 0.0
    %1839 = vmatpush1.msra.mxu0 0.0
    %1840 = vmatprep.subr.mxu0 0.0
    %1841 = vmatpush1.msra.mxu0 0.0
    %1842 = vmatprep.subr.mxu0 0.0
    %1843 = vmatpush1.msra.mxu0 0.0
    %1844 = vmatprep.subr.mxu0 0.0
    %1845 = vmatpush1.msra.mxu0 0.0
    %1846 = vmatprep.subr.mxu0 0.0
    %1847 = vmatpush1.msra.mxu0 0.0
    %1848 = vmatprep.subr.mxu0 0.0
    %1849 = vmatpush1.msra.mxu0 0.0
    %1850 = vmatprep.subr.mxu0 0.0
    %1851 = vmatpush1.msra.mxu0 0.0
    %1852 = vmatprep.subr.mxu0 0.0
    %1853 = vmatpush1.msra.mxu0 0.0
    %1854 = vmatprep.subr.mxu0 0.0
    %1855 = vmatpush1.msra.mxu0 0.0
    %1856 = vmatprep.subr.mxu0 0.0
    %1857 = vmatpush1.msra.mxu0 0.0
    %1858 = vmatprep.subr.mxu0 0.0
    %1859 = vmatpush1.msra.mxu0 0.0
    %1860 = vmatprep.subr.mxu0 0.0
    %1861 = vmatpush1.msra.mxu0 0.0
    %1862 = vmatprep.subr.mxu0 0.0
    %1863 = vmatpush1.msra.mxu0 0.0
    %1864 = vmatprep.subr.mxu0 0.0
    %1865 = vmatpush1.msra.mxu0 0.0
    %1866 = vmatprep.subr.mxu0 0.0
    %1867 = vmatpush1.msra.mxu0 0.0
    %1868 = vmatprep.subr.mxu0 0.0
    %1869 = vmatpush1.msra.mxu0 0.0
    %1870 = vmatprep.subr.mxu0 0.0
    %1871 = vmatpush1.msra.mxu0 0.0
    %1872 = vmatprep.subr.mxu0 0.0
    %1873 = vmatpush1.msra.mxu0 0.0
    %1874 = vmatprep.subr.mxu0 0.0
    %1875 = vmatpush1.msra.mxu0 0.0
    %1876 = vmatprep.subr.mxu0 0.0
    %1877 = vmatpush1.msra.mxu0 0.0
    %1878 = vmatprep.subr.mxu0 0.0
    %1879 = vmatpush1.msra.mxu0 0.0
    %1880 = vmatprep.subr.mxu0 0.0
    %1881 = vmatpush1.msra.mxu0 0.0
    %1882 = vmatprep.subr.mxu0 0.0
    %1883 = vmatpush1.msra.mxu0 0.0
    %1884 = vmatprep.subr.mxu0 0.0
    %1885 = vmatpush1.msra.mxu0 0.0
    %1886 = vmatprep.subr.mxu0 0.0
    %1887 = vmatpush1.msra.mxu0 0.0
    %1888 = vmatprep.subr.mxu0 0.0
    %1889 = vmatpush1.msra.mxu0 0.0
    %1890 = vmatprep.subr.mxu0 0.0
    %1891 = vmatpush1.msra.mxu0 0.0
    %1892 = vmatprep.subr.mxu0 0.0
    %1893 = vmatpush1.msra.mxu0 0.0
    %1894 = vmatprep.mubr.f32.mxu0 0.0
    %1895 = vmatmul.mubr.f32.gmra.mrb[0].mxu0 %v1828
    %v1896 = vpop.f32.mrb[0].mxu0
    %v1897 = vadd.f32 0.0, %v1896
    %v1898 = vpop.f32.mrb[0].mxu0
    %1899 = vdwg.mxu0
    %v1900 = vadd.f32 %v1824, %v1897
    %v1901 = vxor.u32 %v1900, 2147483648
    %v1902 = vmul.f32 %v1901, 1.442695
    %v1903 = vpow.pop %v1902
    %v1904 = vadd.f32 %v1903, 1.0
    %v1905 = vrcp.pop %v1904
    %v1906 = vmul.f32 1.0, %v1905
    %v1907 = vtanh.pop %v1900
    %v1908 = vmul.f32 %v1906, %v1817
    %1910 = vrot.lane.b32.xlu0 %v1907, 32
    %v1911 = vpop.permute.xlu0 %1910
    %v1913 = vmul.f32 %v1906, %v1911
    %1915 = vrot.lane.b32.xlu0 %v1913, 32
    %v1916 = vpop.permute.xlu0 %1915
    %v1918 = vadd.f32 %v1908, %v1916
    %v1919 = vtanh.pop %v1918
    %1921 = vrot.lane.b32.xlu0 %v1919, 32
    %v1922 = vpop.permute.xlu0 %1921
    %v1924 = vmul.f32 %v1906, %v1922
    %v1925 = vld [vmem:[%s958] sm:$0xff]
    %1927 = vrot.lane.b32.xlu0 %v1924, 64
    %v1928 = vpop.permute.xlu0 %1927
    %v1929 = vsel %vm224, %v1928, 0
    %1931 = vmatprep.subr.mxu0 0.0
    %1932 = vmatpush1.msra.mxu0 %v1067
    %1933 = vmatprep.subr.mxu0 0.0
    %1934 = vmatpush1.msra.mxu0 %v1068
    %1935 = vmatprep.subr.mxu0 0.0
    %1936 = vmatpush1.msra.mxu0 %v1069
    %1937 = vmatprep.subr.mxu0 0.0
    %1938 = vmatpush1.msra.mxu0 %v1070
    %1939 = vmatprep.subr.mxu0 0.0
    %1940 = vmatpush1.msra.mxu0 0.0
    %1941 = vmatprep.subr.mxu0 0.0
    %1942 = vmatpush1.msra.mxu0 0.0
    %1943 = vmatprep.subr.mxu0 0.0
    %1944 = vmatpush1.msra.mxu0 0.0
    %1945 = vmatprep.subr.mxu0 0.0
    %1946 = vmatpush1.msra.mxu0 0.0
    %1947 = vmatprep.subr.mxu0 0.0
    %1948 = vmatpush1.msra.mxu0 0.0
    %1949 = vmatprep.subr.mxu0 0.0
    %1950 = vmatpush1.msra.mxu0 0.0
    %1951 = vmatprep.subr.mxu0 0.0
    %1952 = vmatpush1.msra.mxu0 0.0
    %1953 = vmatprep.subr.mxu0 0.0
    %1954 = vmatpush1.msra.mxu0 0.0
    %1955 = vmatprep.subr.mxu0 0.0
    %1956 = vmatpush1.msra.mxu0 0.0
    %1957 = vmatprep.subr.mxu0 0.0
    %1958 = vmatpush1.msra.mxu0 0.0
    %1959 = vmatprep.subr.mxu0 0.0
    %1960 = vmatpush1.msra.mxu0 0.0
    %1961 = vmatprep.subr.mxu0 0.0
    %1962 = vmatpush1.msra.mxu0 0.0
    %1963 = vmatprep.subr.mxu0 0.0
    %1964 = vmatpush1.msra.mxu0 0.0
    %1965 = vmatprep.subr.mxu0 0.0
    %1966 = vmatpush1.msra.mxu0 0.0
    %1967 = vmatprep.subr.mxu0 0.0
    %1968 = vmatpush1.msra.mxu0 0.0
    %1969 = vmatprep.subr.mxu0 0.0
    %1970 = vmatpush1.msra.mxu0 0.0
    %1971 = vmatprep.subr.mxu0 0.0
    %1972 = vmatpush1.msra.mxu0 0.0
    %1973 = vmatprep.subr.mxu0 0.0
    %1974 = vmatpush1.msra.mxu0 0.0
    %1975 = vmatprep.subr.mxu0 0.0
    %1976 = vmatpush1.msra.mxu0 0.0
    %1977 = vmatprep.subr.mxu0 0.0
    %1978 = vmatpush1.msra.mxu0 0.0
    %1979 = vmatprep.subr.mxu0 0.0
    %1980 = vmatpush1.msra.mxu0 0.0
    %1981 = vmatprep.subr.mxu0 0.0
    %1982 = vmatpush1.msra.mxu0 0.0
    %1983 = vmatprep.subr.mxu0 0.0
    %1984 = vmatpush1.msra.mxu0 0.0
    %1985 = vmatprep.subr.mxu0 0.0
    %1986 = vmatpush1.msra.mxu0 0.0
    %1987 = vmatprep.subr.mxu0 0.0
    %1988 = vmatpush1.msra.mxu0 0.0
    %1989 = vmatprep.subr.mxu0 0.0
    %1990 = vmatpush1.msra.mxu0 0.0
    %1991 = vmatprep.subr.mxu0 0.0
    %1992 = vmatpush1.msra.mxu0 0.0
    %1993 = vmatprep.subr.mxu0 0.0
    %1994 = vmatpush1.msra.mxu0 0.0
    %1995 = vmatprep.mubr.f32.mxu0 0.0
    %1996 = vmatmul.mubr.f32.gmra.mrb[0].mxu0 %v1929
    %v1997 = vpop.f32.mrb[0].mxu0
    %v1998 = vadd.f32 0.0, %v1997
    %v1999 = vpop.f32.mrb[0].mxu0
    %2000 = vdwg.mxu0
    %v2001 = vadd.f32 %v1925, %v1998
    %v2002 = vxor.u32 %v2001, 2147483648
    %v2003 = vmul.f32 %v2002, 1.442695
    %v2004 = vpow.pop %v2003
    %v2005 = vadd.f32 %v2004, 1.0
    %v2006 = vrcp.pop %v2005
    %v2007 = vmul.f32 1.0, %v2006
    %v2008 = vtanh.pop %v2001
    %v2009 = vmul.f32 %v2007, %v1918
    %2011 = vrot.lane.b32.xlu0 %v2008, 32
    %v2012 = vpop.permute.xlu0 %2011
    %v2014 = vmul.f32 %v2007, %v2012
    %2016 = vrot.lane.b32.xlu0 %v2014, 32
    %v2017 = vpop.permute.xlu0 %2016
    %v2019 = vadd.f32 %v2009, %v2017
    %v2020 = vtanh.pop %v2019
    %2022 = vrot.lane.b32.xlu0 %v2020, 32
    %v2023 = vpop.permute.xlu0 %2022
    %v2025 = vmul.f32 %v2007, %v2023
    %v2026 = vld [vmem:[#allocation7] sm:$0xff]
    %v2027 = vld [vmem:[#allocation7 + $0x8] sm:$0xff]
    %v2028 = vld [vmem:[#allocation7 + $0x10] sm:$0xff]
    %v2029 = vld [vmem:[#allocation7 + $0x18] sm:$0xff]
    %v2030 = vld [vmem:[%s8] sm:$0x1]
    %v2032 = vlaneseq
    %v2033 = vshrl.u32 %v2032, 7
    %v2034 = vsub.s32 0, %v2033
    %v2035 = vrot.slane %v2030, %v2034
    %2038 = vrot.lane.b32.xlu0 %v2025, 64
    %v2039 = vpop.permute.xlu0 %2038
    %v2040 = vsel %vm224, %v2039, 0
    %2042 = vmatprep.subr.mxu0 0.0
    %2043 = vmatpush1.msra.mxu0 %v2026
    %2044 = vmatprep.subr.mxu0 0.0
    %2045 = vmatpush1.msra.mxu0 %v2027
    %2046 = vmatprep.subr.mxu0 0.0
    %2047 = vmatpush1.msra.mxu0 %v2028
    %2048 = vmatprep.subr.mxu0 0.0
    %2049 = vmatpush1.msra.mxu0 %v2029
    %2050 = vmatprep.subr.mxu0 0.0
    %2051 = vmatpush1.msra.mxu0 0.0
    %2052 = vmatprep.subr.mxu0 0.0
    %2053 = vmatpush1.msra.mxu0 0.0
    %2054 = vmatprep.subr.mxu0 0.0
    %2055 = vmatpush1.msra.mxu0 0.0
    %2056 = vmatprep.subr.mxu0 0.0
    %2057 = vmatpush1.msra.mxu0 0.0
    %2058 = vmatprep.subr.mxu0 0.0
    %2059 = vmatpush1.msra.mxu0 0.0
    %2060 = vmatprep.subr.mxu0 0.0
    %2061 = vmatpush1.msra.mxu0 0.0
    %2062 = vmatprep.subr.mxu0 0.0
    %2063 = vmatpush1.msra.mxu0 0.0
    %2064 = vmatprep.subr.mxu0 0.0
    %2065 = vmatpush1.msra.mxu0 0.0
    %2066 = vmatprep.subr.mxu0 0.0
    %2067 = vmatpush1.msra.mxu0 0.0
    %2068 = vmatprep.subr.mxu0 0.0
    %2069 = vmatpush1.msra.mxu0 0.0
    %2070 = vmatprep.subr.mxu0 0.0
    %2071 = vmatpush1.msra.mxu0 0.0
    %2072 = vmatprep.subr.mxu0 0.0
    %2073 = vmatpush1.msra.mxu0 0.0
    %2074 = vmatprep.subr.mxu0 0.0
    %2075 = vmatpush1.msra.mxu0 0.0
    %2076 = vmatprep.subr.mxu0 0.0
    %2077 = vmatpush1.msra.mxu0 0.0
    %2078 = vmatprep.subr.mxu0 0.0
    %2079 = vmatpush1.msra.mxu0 0.0
    %2080 = vmatprep.subr.mxu0 0.0
    %2081 = vmatpush1.msra.mxu0 0.0
    %2082 = vmatprep.subr.mxu0 0.0
    %2083 = vmatpush1.msra.mxu0 0.0
    %2084 = vmatprep.subr.mxu0 0.0
    %2085 = vmatpush1.msra.mxu0 0.0
    %2086 = vmatprep.subr.mxu0 0.0
    %2087 = vmatpush1.msra.mxu0 0.0
    %2088 = vmatprep.subr.mxu0 0.0
    %2089 = vmatpush1.msra.mxu0 0.0
    %2090 = vmatprep.subr.mxu0 0.0
    %2091 = vmatpush1.msra.mxu0 0.0
    %2092 = vmatprep.subr.mxu0 0.0
    %2093 = vmatpush1.msra.mxu0 0.0
    %2094 = vmatprep.subr.mxu0 0.0
    %2095 = vmatpush1.msra.mxu0 0.0
    %2096 = vmatprep.subr.mxu0 0.0
    %2097 = vmatpush1.msra.mxu0 0.0
    %2098 = vmatprep.subr.mxu0 0.0
    %2099 = vmatpush1.msra.mxu0 0.0
    %2100 = vmatprep.subr.mxu0 0.0
    %2101 = vmatpush1.msra.mxu0 0.0
    %2102 = vmatprep.subr.mxu0 0.0
    %2103 = vmatpush1.msra.mxu0 0.0
    %2104 = vmatprep.subr.mxu0 0.0
    %2105 = vmatpush1.msra.mxu0 0.0
    %2106 = vmatprep.mubr.f32.mxu0 0.0
    %2107 = vmatmul.mubr.f32.gmra.mrb[0].mxu0 %v2040
    %v2108 = vpop.f32.mrb[0].mxu0
    %v2109 = vadd.f32 %v2035, %v2108
    %v2110 = vpop.f32.mrb[0].mxu0
    %2111 = vdwg.mxu0
    %2112 = vst [vmem:[#allocation9] sm:$0xff] %v2109
    // Predicated region
    $region46: #{tpu_custom_call.1} parent=1 // pred_check
      _
    $region47: #{tpu_custom_call.1} parent=1 // pred_check_branch
      %2114 = sbr.rel (0) target = $region49
    $region48: #{tpu_custom_call.1} parent=1 // pred_region
      %s2116 = ssub.s32 128, 128
      %2117 = vsyncadd [#allocation6], %s2116
      %s2119 = sshll.u32 [#allocation9], 4
      %s2120 = int_to_ptr.vmem [resolvable:$true] %s2119
      %2122 = dma.vmem_to_hbm [thread:$0]  %s2120, 128, %s9, [#allocation6]
    $region49: #{tpu_custom_call.1} parent=1 // pred_fallthru
      _
    // Predicated region
    $region50: #{tpu_custom_call.1} parent=1 // pred_check
      _
    $region51: #{tpu_custom_call.1} parent=1 // pred_check_branch
      %2124 = sbr.rel (0) target = $region53
    $region52: #{tpu_custom_call.1} parent=1 // pred_region
      %2125 = dma.done [#allocation6], 128
    $region53: #{tpu_custom_call.1} parent=1 // pred_fallthru
      _
    %2126 = vsyncpa [#allocation5], 1
    %2127 = vsyncpa [#allocation8], 1
    %2128 = vsyncpa [#allocation6], 1

</llo_original>
